<compile_context>
chip_gen: v7x
topology: tpu7x:2x2x1
jax: 0.10.0
libtpu: 0.0.40
codegen_flags: <defaults>
</compile_context>

<pallas_src>
import functools
import math

import jax
import jax.numpy as jnp
from jax.experimental import pallas as pl
from jax.experimental.pallas import tpu as pltpu


# ----------------------------- Pallas kernel ------------------------------ #
def sasa_kernel(x_ref, w_ref, relb_ref, o_ref, *, H, W, pad, K, Co, seg):
    """One batch element per grid step (everything lane-dense).

    x_ref    : (1, Hp, Wp*Cin)   zero-padded input, (w, cin) flattened to lanes
    w_ref    : (Wp*Cin, 3*seg)   block-diag fused QKV weight; lane segment p
                                 of the matmul output is projection p, laid out
                                 as [..., w*Co + c] (lane-dense, seg = lane-pad)
    relb_ref : (K*K, W*Co)       per-(kh,kw) channel bias, tiled across w
    o_ref    : (1, H, W*Co)      lane-dense output (reshaped to NHWC outside)
    """
    WCo = W * Co

    # ---- fused QKV projection: one MXU matmul, output already lane-dense.
    xpf = x_ref[0]                                            # (Hp, Wp*Cin)
    qkv = jnp.dot(xpf, w_ref[...],
                  preferred_element_type=jnp.float32)         # (Hp, 3*seg)

    q_dense = qkv[:, 0 * seg:1 * seg]                         # (Hp, seg)
    k_dense = qkv[:, 1 * seg:2 * seg]
    v_dense = qkv[:, 2 * seg:3 * seg]

    # q for the interior pixels: lane index w*Co+c, so shifting the lane start
    # by pad*Co maps w -> w+pad (a static lane-offset slice == XLU lane shift).
    q = q_dense[pad:pad + H, pad * Co:pad * Co + WCo]         # (H, WCo)

    # Pre-shift k for each kw once (lane shift by kw*Co); kh is a sublane slice
    # taken inside the loop.
    k_sh = [k_dense[:, kw * Co:kw * Co + WCo] for kw in range(K)]   # (Hp, WCo)

    # ---- pass 1: per-pixel/per-channel max over the K*K window positions.
    m = jnp.full((H, WCo), -jnp.inf, dtype=jnp.float32)
    for kh in range(K):
        for kw in range(K):
            s = q * k_sh[kw][kh:kh + H, :]
            m = jnp.maximum(m, s)

    # ---- pass 2: exp / accumulate (no online rescaling needed).
    v_sh = [v_dense[:, kw * Co:kw * Co + WCo] for kw in range(K)]
    l = jnp.zeros((H, WCo), dtype=jnp.float32)
    acc = jnp.zeros((H, WCo), dtype=jnp.float32)
    for kh in range(K):
        for kw in range(K):
            kk = kh * K + kw
            p = jnp.exp(q * k_sh[kw][kh:kh + H, :] - m)
            vs = v_sh[kw][kh:kh + H, :] + relb_ref[kk:kk + 1, :]
            l = l + p
            acc = acc + p * vs

    # Exact divide (keeps us well inside the 1e-4 reference tolerance).
    o_ref[0] = (acc / l).astype(o_ref.dtype)


# ------------------------------ JAX wrapper -------------------------------- #
def attention_conv_forward(x_nchw, wq, wk, wv, rel_h, rel_w, *, kernel_size, padding):
    """x_nchw: (B, Cin, H, W); wq/wk/wv: (Co, Cin); rel_h: (Co//2,1,1,K,1);
    rel_w: (Co//2,1,1,1,K). Returns (B, Co, H, W).  stride=1 assumed (the
    PyTorch forward only reshapes consistently when unfolded spatial == (H,W));
    `groups` does not change the math."""
    B, Cin, H, W = x_nchw.shape
    Co = wq.shape[0]
    K = kernel_size
    pad = padding
    Hp, Wp = H + 2 * pad, W + 2 * pad
    WCo = W * Co
    seg = pl.cdiv(Wp * Co, 128) * 128        # lane-padded segment per projection

    # --- layout plumbing only: NCHW -> NHWC, zero pad, flatten (w,cin) to lanes.
    x_nhwc = jnp.transpose(x_nchw, (0, 2, 3, 1))
    xp = jnp.pad(x_nhwc, ((0, 0), (pad, pad), (pad, pad), (0, 0)))
    x_dense = xp.reshape(B, Hp, Wp * Cin).astype(jnp.float32)

    # --- fused, lane-dense QKV weight (one-time pack in the wrapper):
    #   qkv[h, p*seg + w*Co + c] = sum_i xp[h, w, i] * w_p[i, c]
    # i.e. block-diagonal over w, with zero lane padding up to `seg`.
    wqkv = jnp.transpose(jnp.stack([wq, wk, wv], axis=0), (0, 2, 1))  # (3,Cin,Co)
    eye_w = jnp.eye(Wp, dtype=jnp.float32)
    blk = jnp.einsum('xy,pic->pxiyc', eye_w, wqkv.astype(jnp.float32))
    blk = blk.reshape(3, Wp * Cin, Wp * Co)
    blk = jnp.pad(blk, ((0, 0), (0, 0), (0, seg - Wp * Co)))          # (3,WpCin,seg)
    w_fused = jnp.transpose(blk, (1, 0, 2)).reshape(Wp * Cin, 3 * seg)

    # --- rel_h / rel_w packed per (kh,kw) and tiled across w on the lane axis:
    #   relb[kh*K+kw, w*Co+c] = rel_h[c, kh]       for c <  Co/2
    #                         = rel_w[c-Co/2, kw]  for c >= Co/2
    rh = rel_h[:, 0, 0, :, 0]                                         # (Co/2, K)
    rw = rel_w[:, 0, 0, 0, :]                                         # (Co/2, K)
    bias = jnp.concatenate(
        [jnp.broadcast_to(rh.T[:, None, :], (K, K, Co // 2)),
         jnp.broadcast_to(rw.T[None, :, :], (K, K, Co // 2))],
        axis=-1).reshape(K * K, 1, Co)
    rel_dense = jnp.broadcast_to(bias, (K * K, W, Co)).reshape(K * K, WCo)
    rel_dense = rel_dense.astype(jnp.float32)

    kern = functools.partial(sasa_kernel, H=H, W=W, pad=pad, K=K, Co=Co, seg=seg)

    # TODO(synk): for production SASA shapes (e.g. H=W=56, Co=256) add an
    # H-tile grid axis with a pad-row halo and bf16 k/v (v6e/v7x) so the
    # working set stays under v7x's 64 MiB VMEM and both v7x TCs get work
    # when B is 1 or odd; unnecessary at these toy shapes.
    out_dense = pl.pallas_call(
        kern,
        out_shape=jax.ShapeDtypeStruct((B, H, WCo), x_nchw.dtype),
        grid_spec=pltpu.PrefetchScalarGridSpec(
            num_scalar_prefetch=0,
            grid=(B,),
            in_specs=[
                pl.BlockSpec((1, Hp, Wp * Cin), lambda b: (b, 0, 0)),
                pl.BlockSpec((Wp * Cin, 3 * seg), lambda b: (0, 0)),
                pl.BlockSpec((K * K, WCo), lambda b: (0, 0)),
            ],
            out_specs=pl.BlockSpec((1, H, WCo), lambda b: (b, 0, 0)),
        ),
        compiler_params=pltpu.CompilerParams(
            dimension_semantics=("parallel",),
            vmem_limit_bytes=64 * 1024 * 1024),
    )(x_dense, w_fused, rel_dense)

    # lane-dense (B, H, W*Co) -> NHWC -> NCHW
    out_nhwc = out_dense.reshape(B, H, W, Co)
    return jnp.transpose(out_nhwc, (0, 3, 1, 2))


# ------------------------- pure-JAX reference ------------------------------ #
def attention_conv_reference(x, wq, wk, wv, rel_h, rel_w, *, kernel_size, padding):
    B, Cin, H, W = x.shape
    Co = wq.shape[0]
    K, pad = kernel_size, padding
    xp = jnp.pad(x, ((0, 0), (0, 0), (pad, pad), (pad, pad)))
    q = jnp.einsum('bchw,oc->bohw', x, wq)
    k = jnp.einsum('bchw,oc->bohw', xp, wk)
    v = jnp.einsum('bchw,oc->bohw', xp, wv)

    def unfold(t):  # (B,Co,Hp,Wp) -> (B,Co,H,W,K,K)
        return jnp.stack(
            [jnp.stack([t[:, :, kh:kh + H, kw:kw + W] for kw in range(K)], axis=-1)
             for kh in range(K)], axis=-2)

    k_unf = unfold(k)
    v_unf = unfold(v)
    vh = v_unf[:, :Co // 2] + rel_h[None]
    vw = v_unf[:, Co // 2:] + rel_w[None]
    v_unf = jnp.concatenate([vh, vw], axis=1)
    k_flat = k_unf.reshape(B, Co, H, W, K * K)
    v_flat = v_unf.reshape(B, Co, H, W, K * K)
    logits = q[..., None] * k_flat
    attn = jax.nn.softmax(logits, axis=-1)
    return (attn * v_flat).sum(-1)


# ---------------------------------- main ----------------------------------- #
if __name__ == "__main__":
    # Module config (matches the PyTorch __init__ shapes).
    in_channels, out_channels = 4, 16
    kernel_size, stride, padding, groups = 3, 1, 1, 2
    B, H, W = 2, 16, 16

    key = jax.random.PRNGKey(0)
    kq, kk_, kv, krh, krw, kx = jax.random.split(key, 6)

    # kaiming_normal_(mode='fan_out', nonlinearity='relu'): std = sqrt(2/fan_out),
    # fan_out = out_channels * 1 * 1 for a 1x1 conv.
    std = math.sqrt(2.0 / out_channels)
    wq = std * jax.random.normal(kq, (out_channels, in_channels), jnp.float32)
    wk = std * jax.random.normal(kk_, (out_channels, in_channels), jnp.float32)
    wv = std * jax.random.normal(kv, (out_channels, in_channels), jnp.float32)
    rel_h = jax.random.normal(krh, (out_channels // 2, 1, 1, kernel_size, 1), jnp.float32)
    rel_w = jax.random.normal(krw, (out_channels // 2, 1, 1, 1, kernel_size), jnp.float32)

    x = jax.random.normal(kx, (B, in_channels, H, W), jnp.float32)

    out = attention_conv_forward(x, wq, wk, wv, rel_h, rel_w,
                                 kernel_size=kernel_size, padding=padding)
    out = jax.block_until_ready(out)

    ref = attention_conv_reference(x, wq, wk, wv, rel_h, rel_w,
                                   kernel_size=kernel_size, padding=padding)
    assert out.shape == (B, out_channels, H, W)
    assert jnp.allclose(out, ref, atol=1e-4, rtol=1e-4), (
        f"max abs err = {jnp.max(jnp.abs(out - ref))}")
    print("KERNEL_OK")
</pallas_src>

<mosaic_0001>
module attributes {stable_mosaic.version = 11 : i64} {
  func.func @sasa_kernel(%arg0: i32, %arg1: memref<1x18x72xf32, #tpu.memory_space<vmem>>, %arg2: memref<72x1152xf32, #tpu.memory_space<vmem>>, %arg3: memref<9x256xf32, #tpu.memory_space<vmem>>, %arg4: memref<1x16x256xf32, #tpu.memory_space<vmem>>) attributes {dimension_semantics = [#tpu.dimension_semantics<parallel>], iteration_bounds = array<i64: 2>, scalar_prefetch = 0 : i64, scratch_operands = 0 : i64, tpu.core_type = #tpu.core_type<tc>, window_params = [{transform_indices = @transform_0, window_bounds = array<i64: 1, 18, 72>}, {pipeline_mode = #tpu.pipeline_mode<synchronous>, transform_indices = @transform_1, window_bounds = array<i64: 72, 1152>}, {pipeline_mode = #tpu.pipeline_mode<synchronous>, transform_indices = @transform_2, window_bounds = array<i64: 9, 256>}, {transform_indices = @transform_3, window_bounds = array<i64: 1, 16, 256>}]} {
    %c0 = arith.constant 0 : index
    %c0_0 = arith.constant 0 : index
    %c0_1 = arith.constant 0 : index
    %0 = vector.load %arg1[%c0, %c0_0, %c0_1] : memref<1x18x72xf32, #tpu.memory_space<vmem>>, vector<1x18x72xf32>
    %1 = vector.shape_cast %0 : vector<1x18x72xf32> to vector<18x72xf32>
    %c0_2 = arith.constant 0 : index
    %c0_3 = arith.constant 0 : index
    %2 = vector.load %arg2[%c0_2, %c0_3] : memref<72x1152xf32, #tpu.memory_space<vmem>>, vector<72x1152xf32>
    %cst = arith.constant dense<0.000000e+00> : vector<18x1152xf32>
    %3 = tpu.matmul %1, %2, %cst {dimension_numbers = #tpu.dot_dimension_numbers<[1], [0], [0], [1], [0, 0, 1, 1], [], []>} : vector<18x72xf32>, vector<72x1152xf32>, vector<18x1152xf32> -> vector<18x1152xf32>
    %4 = vector.extract_strided_slice %3 {offsets = [0, 0], sizes = [18, 384], strides = [1, 1]} : vector<18x1152xf32> to vector<18x384xf32>
    %5 = vector.extract_strided_slice %3 {offsets = [0, 384], sizes = [18, 384], strides = [1, 1]} : vector<18x1152xf32> to vector<18x384xf32>
    %6 = vector.extract_strided_slice %3 {offsets = [0, 768], sizes = [18, 384], strides = [1, 1]} : vector<18x1152xf32> to vector<18x384xf32>
    %7 = vector.extract_strided_slice %4 {offsets = [1, 16], sizes = [16, 256], strides = [1, 1]} : vector<18x384xf32> to vector<16x256xf32>
    %8 = vector.extract_strided_slice %5 {offsets = [0, 0], sizes = [18, 256], strides = [1, 1]} : vector<18x384xf32> to vector<18x256xf32>
    %9 = vector.extract_strided_slice %5 {offsets = [0, 16], sizes = [18, 256], strides = [1, 1]} : vector<18x384xf32> to vector<18x256xf32>
    %10 = vector.extract_strided_slice %5 {offsets = [0, 32], sizes = [18, 256], strides = [1, 1]} : vector<18x384xf32> to vector<18x256xf32>
    %cst_4 = arith.constant 0xFF800000 : f32
    %11 = vector.broadcast %cst_4 : f32 to vector<16x256xf32>
    %12 = vector.extract_strided_slice %8 {offsets = [0, 0], sizes = [16, 256], strides = [1, 1]} : vector<18x256xf32> to vector<16x256xf32>
    %13 = arith.mulf %7, %12 : vector<16x256xf32>
    %14 = arith.maximumf %11, %13 : vector<16x256xf32>
    %15 = vector.extract_strided_slice %9 {offsets = [0, 0], sizes = [16, 256], strides = [1, 1]} : vector<18x256xf32> to vector<16x256xf32>
    %16 = arith.mulf %7, %15 : vector<16x256xf32>
    %17 = arith.maximumf %14, %16 : vector<16x256xf32>
    %18 = vector.extract_strided_slice %10 {offsets = [0, 0], sizes = [16, 256], strides = [1, 1]} : vector<18x256xf32> to vector<16x256xf32>
    %19 = arith.mulf %7, %18 : vector<16x256xf32>
    %20 = arith.maximumf %17, %19 : vector<16x256xf32>
    %21 = vector.extract_strided_slice %8 {offsets = [1, 0], sizes = [16, 256], strides = [1, 1]} : vector<18x256xf32> to vector<16x256xf32>
    %22 = arith.mulf %7, %21 : vector<16x256xf32>
    %23 = arith.maximumf %20, %22 : vector<16x256xf32>
    %24 = vector.extract_strided_slice %9 {offsets = [1, 0], sizes = [16, 256], strides = [1, 1]} : vector<18x256xf32> to vector<16x256xf32>
    %25 = arith.mulf %7, %24 : vector<16x256xf32>
    %26 = arith.maximumf %23, %25 : vector<16x256xf32>
    %27 = vector.extract_strided_slice %10 {offsets = [1, 0], sizes = [16, 256], strides = [1, 1]} : vector<18x256xf32> to vector<16x256xf32>
    %28 = arith.mulf %7, %27 : vector<16x256xf32>
    %29 = arith.maximumf %26, %28 : vector<16x256xf32>
    %30 = vector.extract_strided_slice %8 {offsets = [2, 0], sizes = [16, 256], strides = [1, 1]} : vector<18x256xf32> to vector<16x256xf32>
    %31 = arith.mulf %7, %30 : vector<16x256xf32>
    %32 = arith.maximumf %29, %31 : vector<16x256xf32>
    %33 = vector.extract_strided_slice %9 {offsets = [2, 0], sizes = [16, 256], strides = [1, 1]} : vector<18x256xf32> to vector<16x256xf32>
    %34 = arith.mulf %7, %33 : vector<16x256xf32>
    %35 = arith.maximumf %32, %34 : vector<16x256xf32>
    %36 = vector.extract_strided_slice %10 {offsets = [2, 0], sizes = [16, 256], strides = [1, 1]} : vector<18x256xf32> to vector<16x256xf32>
    %37 = arith.mulf %7, %36 : vector<16x256xf32>
    %38 = arith.maximumf %35, %37 : vector<16x256xf32>
    %39 = vector.extract_strided_slice %6 {offsets = [0, 0], sizes = [18, 256], strides = [1, 1]} : vector<18x384xf32> to vector<18x256xf32>
    %40 = vector.extract_strided_slice %6 {offsets = [0, 16], sizes = [18, 256], strides = [1, 1]} : vector<18x384xf32> to vector<18x256xf32>
    %41 = vector.extract_strided_slice %6 {offsets = [0, 32], sizes = [18, 256], strides = [1, 1]} : vector<18x384xf32> to vector<18x256xf32>
    %cst_5 = arith.constant 0.000000e+00 : f32
    %42 = vector.broadcast %cst_5 : f32 to vector<16x256xf32>
    %cst_6 = arith.constant 0.000000e+00 : f32
    %43 = vector.broadcast %cst_6 : f32 to vector<16x256xf32>
    %44 = vector.extract_strided_slice %8 {offsets = [0, 0], sizes = [16, 256], strides = [1, 1]} : vector<18x256xf32> to vector<16x256xf32>
    %45 = arith.mulf %7, %44 : vector<16x256xf32>
    %46 = arith.subf %45, %38 : vector<16x256xf32>
    %47 = math.exp %46 : vector<16x256xf32>
    %48 = vector.extract_strided_slice %39 {offsets = [0, 0], sizes = [16, 256], strides = [1, 1]} : vector<18x256xf32> to vector<16x256xf32>
    %c0_7 = arith.constant 0 : index
    %c0_8 = arith.constant 0 : index
    %49 = vector.load %arg3[%c0_7, %c0_8] : memref<9x256xf32, #tpu.memory_space<vmem>>, vector<1x256xf32>
    %50 = vector.broadcast %49 : vector<1x256xf32> to vector<16x256xf32>
    %51 = arith.addf %48, %50 : vector<16x256xf32>
    %52 = arith.addf %42, %47 : vector<16x256xf32>
    %53 = arith.mulf %47, %51 : vector<16x256xf32>
    %54 = arith.addf %43, %53 : vector<16x256xf32>
    %55 = vector.extract_strided_slice %9 {offsets = [0, 0], sizes = [16, 256], strides = [1, 1]} : vector<18x256xf32> to vector<16x256xf32>
    %56 = arith.mulf %7, %55 : vector<16x256xf32>
    %57 = arith.subf %56, %38 : vector<16x256xf32>
    %58 = math.exp %57 : vector<16x256xf32>
    %59 = vector.extract_strided_slice %40 {offsets = [0, 0], sizes = [16, 256], strides = [1, 1]} : vector<18x256xf32> to vector<16x256xf32>
    %c1 = arith.constant 1 : index
    %c0_9 = arith.constant 0 : index
    %60 = vector.load %arg3[%c1, %c0_9] : memref<9x256xf32, #tpu.memory_space<vmem>>, vector<1x256xf32>
    %61 = vector.broadcast %60 : vector<1x256xf32> to vector<16x256xf32>
    %62 = arith.addf %59, %61 : vector<16x256xf32>
    %63 = arith.addf %52, %58 : vector<16x256xf32>
    %64 = arith.mulf %58, %62 : vector<16x256xf32>
    %65 = arith.addf %54, %64 : vector<16x256xf32>
    %66 = vector.extract_strided_slice %10 {offsets = [0, 0], sizes = [16, 256], strides = [1, 1]} : vector<18x256xf32> to vector<16x256xf32>
    %67 = arith.mulf %7, %66 : vector<16x256xf32>
    %68 = arith.subf %67, %38 : vector<16x256xf32>
    %69 = math.exp %68 : vector<16x256xf32>
    %70 = vector.extract_strided_slice %41 {offsets = [0, 0], sizes = [16, 256], strides = [1, 1]} : vector<18x256xf32> to vector<16x256xf32>
    %c2 = arith.constant 2 : index
    %c0_10 = arith.constant 0 : index
    %71 = vector.load %arg3[%c2, %c0_10] : memref<9x256xf32, #tpu.memory_space<vmem>>, vector<1x256xf32>
    %72 = vector.broadcast %71 : vector<1x256xf32> to vector<16x256xf32>
    %73 = arith.addf %70, %72 : vector<16x256xf32>
    %74 = arith.addf %63, %69 : vector<16x256xf32>
    %75 = arith.mulf %69, %73 : vector<16x256xf32>
    %76 = arith.addf %65, %75 : vector<16x256xf32>
    %77 = vector.extract_strided_slice %8 {offsets = [1, 0], sizes = [16, 256], strides = [1, 1]} : vector<18x256xf32> to vector<16x256xf32>
    %78 = arith.mulf %7, %77 : vector<16x256xf32>
    %79 = arith.subf %78, %38 : vector<16x256xf32>
    %80 = math.exp %79 : vector<16x256xf32>
    %81 = vector.extract_strided_slice %39 {offsets = [1, 0], sizes = [16, 256], strides = [1, 1]} : vector<18x256xf32> to vector<16x256xf32>
    %c3 = arith.constant 3 : index
    %c0_11 = arith.constant 0 : index
    %82 = vector.load %arg3[%c3, %c0_11] : memref<9x256xf32, #tpu.memory_space<vmem>>, vector<1x256xf32>
    %83 = vector.broadcast %82 : vector<1x256xf32> to vector<16x256xf32>
    %84 = arith.addf %81, %83 : vector<16x256xf32>
    %85 = arith.addf %74, %80 : vector<16x256xf32>
    %86 = arith.mulf %80, %84 : vector<16x256xf32>
    %87 = arith.addf %76, %86 : vector<16x256xf32>
    %88 = vector.extract_strided_slice %9 {offsets = [1, 0], sizes = [16, 256], strides = [1, 1]} : vector<18x256xf32> to vector<16x256xf32>
    %89 = arith.mulf %7, %88 : vector<16x256xf32>
    %90 = arith.subf %89, %38 : vector<16x256xf32>
    %91 = math.exp %90 : vector<16x256xf32>
    %92 = vector.extract_strided_slice %40 {offsets = [1, 0], sizes = [16, 256], strides = [1, 1]} : vector<18x256xf32> to vector<16x256xf32>
    %c4 = arith.constant 4 : index
    %c0_12 = arith.constant 0 : index
    %93 = vector.load %arg3[%c4, %c0_12] : memref<9x256xf32, #tpu.memory_space<vmem>>, vector<1x256xf32>
    %94 = vector.broadcast %93 : vector<1x256xf32> to vector<16x256xf32>
    %95 = arith.addf %92, %94 : vector<16x256xf32>
    %96 = arith.addf %85, %91 : vector<16x256xf32>
    %97 = arith.mulf %91, %95 : vector<16x256xf32>
    %98 = arith.addf %87, %97 : vector<16x256xf32>
    %99 = vector.extract_strided_slice %10 {offsets = [1, 0], sizes = [16, 256], strides = [1, 1]} : vector<18x256xf32> to vector<16x256xf32>
    %100 = arith.mulf %7, %99 : vector<16x256xf32>
    %101 = arith.subf %100, %38 : vector<16x256xf32>
    %102 = math.exp %101 : vector<16x256xf32>
    %103 = vector.extract_strided_slice %41 {offsets = [1, 0], sizes = [16, 256], strides = [1, 1]} : vector<18x256xf32> to vector<16x256xf32>
    %c5 = arith.constant 5 : index
    %c0_13 = arith.constant 0 : index
    %104 = vector.load %arg3[%c5, %c0_13] : memref<9x256xf32, #tpu.memory_space<vmem>>, vector<1x256xf32>
    %105 = vector.broadcast %104 : vector<1x256xf32> to vector<16x256xf32>
    %106 = arith.addf %103, %105 : vector<16x256xf32>
    %107 = arith.addf %96, %102 : vector<16x256xf32>
    %108 = arith.mulf %102, %106 : vector<16x256xf32>
    %109 = arith.addf %98, %108 : vector<16x256xf32>
    %110 = vector.extract_strided_slice %8 {offsets = [2, 0], sizes = [16, 256], strides = [1, 1]} : vector<18x256xf32> to vector<16x256xf32>
    %111 = arith.mulf %7, %110 : vector<16x256xf32>
    %112 = arith.subf %111, %38 : vector<16x256xf32>
    %113 = math.exp %112 : vector<16x256xf32>
    %114 = vector.extract_strided_slice %39 {offsets = [2, 0], sizes = [16, 256], strides = [1, 1]} : vector<18x256xf32> to vector<16x256xf32>
    %c6 = arith.constant 6 : index
    %c0_14 = arith.constant 0 : index
    %115 = vector.load %arg3[%c6, %c0_14] : memref<9x256xf32, #tpu.memory_space<vmem>>, vector<1x256xf32>
    %116 = vector.broadcast %115 : vector<1x256xf32> to vector<16x256xf32>
    %117 = arith.addf %114, %116 : vector<16x256xf32>
    %118 = arith.addf %107, %113 : vector<16x256xf32>
    %119 = arith.mulf %113, %117 : vector<16x256xf32>
    %120 = arith.addf %109, %119 : vector<16x256xf32>
    %121 = vector.extract_strided_slice %9 {offsets = [2, 0], sizes = [16, 256], strides = [1, 1]} : vector<18x256xf32> to vector<16x256xf32>
    %122 = arith.mulf %7, %121 : vector<16x256xf32>
    %123 = arith.subf %122, %38 : vector<16x256xf32>
    %124 = math.exp %123 : vector<16x256xf32>
    %125 = vector.extract_strided_slice %40 {offsets = [2, 0], sizes = [16, 256], strides = [1, 1]} : vector<18x256xf32> to vector<16x256xf32>
    %c7 = arith.constant 7 : index
    %c0_15 = arith.constant 0 : index
    %126 = vector.load %arg3[%c7, %c0_15] : memref<9x256xf32, #tpu.memory_space<vmem>>, vector<1x256xf32>
    %127 = vector.broadcast %126 : vector<1x256xf32> to vector<16x256xf32>
    %128 = arith.addf %125, %127 : vector<16x256xf32>
    %129 = arith.addf %118, %124 : vector<16x256xf32>
    %130 = arith.mulf %124, %128 : vector<16x256xf32>
    %131 = arith.addf %120, %130 : vector<16x256xf32>
    %132 = vector.extract_strided_slice %10 {offsets = [2, 0], sizes = [16, 256], strides = [1, 1]} : vector<18x256xf32> to vector<16x256xf32>
    %133 = arith.mulf %7, %132 : vector<16x256xf32>
    %134 = arith.subf %133, %38 : vector<16x256xf32>
    %135 = math.exp %134 : vector<16x256xf32>
    %136 = vector.extract_strided_slice %41 {offsets = [2, 0], sizes = [16, 256], strides = [1, 1]} : vector<18x256xf32> to vector<16x256xf32>
    %c8 = arith.constant 8 : index
    %c0_16 = arith.constant 0 : index
    %137 = vector.load %arg3[%c8, %c0_16] : memref<9x256xf32, #tpu.memory_space<vmem>>, vector<1x256xf32>
    %138 = vector.broadcast %137 : vector<1x256xf32> to vector<16x256xf32>
    %139 = arith.addf %136, %138 : vector<16x256xf32>
    %140 = arith.addf %129, %135 : vector<16x256xf32>
    %141 = arith.mulf %135, %139 : vector<16x256xf32>
    %142 = arith.addf %131, %141 : vector<16x256xf32>
    %143 = arith.divf %142, %140 : vector<16x256xf32>
    %c0_17 = arith.constant 0 : index
    %c0_18 = arith.constant 0 : index
    %c0_19 = arith.constant 0 : index
    %144 = vector.load %arg4[%c0_17, %c0_18, %c0_19] : memref<1x16x256xf32, #tpu.memory_space<vmem>>, vector<1x16x256xf32>
    %145 = vector.shape_cast %144 : vector<1x16x256xf32> to vector<16x256xf32>
    %146 = vector.shape_cast %143 : vector<16x256xf32> to vector<1x16x256xf32>
    tpu.vector_store %arg4[%c0_17, %c0_18, %c0_19], %146 {strides = array<i32>} : memref<1x16x256xf32, #tpu.memory_space<vmem>>, vector<1x16x256xf32>,
    return
  }
  func.func @transform_0(%arg0: i32) -> (i32, i32, i32) {
    %c0_i32 = arith.constant 0 : i32
    %c0_i32_0 = arith.constant 0 : i32
    %c0_i32_1 = arith.constant 0 : i32
    return %arg0, %c0_i32, %c0_i32_0 : i32, i32, i32
  }
  func.func @transform_1(%arg0: i32) -> (i32, i32) {
    %c0_i32 = arith.constant 0 : i32
    %c0_i32_0 = arith.constant 0 : i32
    %c0_i32_1 = arith.constant 0 : i32
    return %c0_i32, %c0_i32_0 : i32, i32
  }
  func.func @transform_2(%arg0: i32) -> (i32, i32) {
    %c0_i32 = arith.constant 0 : i32
    %c0_i32_0 = arith.constant 0 : i32
    %c0_i32_1 = arith.constant 0 : i32
    return %c0_i32, %c0_i32_0 : i32, i32
  }
  func.func @transform_3(%arg0: i32) -> (i32, i32, i32) {
    %c0_i32 = arith.constant 0 : i32
    %c0_i32_0 = arith.constant 0 : i32
    %c0_i32_1 = arith.constant 0 : i32
    return %arg0, %c0_i32, %c0_i32_0 : i32, i32, i32
  }
}

</mosaic_0001>

<llo_original>
// kernel: tpu_custom_call.1
$region0: #{tpu_custom_call.1}
  #allocation0 [shape = 'u32[]', space=smem, size = 0x4, offset = 0x4, fixed_abs, tag = 'smem constant byte address 0x4 - core index']
  #allocation1 [shape = 'u32[144,128]{1,0:T(1,128)}', space=vmem, size = 0x12000, scoped, tag = 'internal scratch']
  %s0 = inlined_call_operand.hbm [shape: f32[2,18,72], index: 0, kind: input, shape index: {}]
  %s1 = inlined_call_operand.hbm [shape: f32[72,1152], index: 1, kind: input, shape index: {}]
  %s2 = inlined_call_operand.hbm [shape: f32[9,256], index: 2, kind: input, shape index: {}]
  %s3 = inlined_call_operand.hbm [shape: f32[2,16,256], index: 3, kind: output, shape index: {}]
  %s4 = sld [smem:[#allocation0]]
  $region57: #{tpu_custom_call.1} parent=0
    _
  %s6 = ssub.s32 1, %s4
  %s7 = scalar_select 0, %s6, %s4
  $region1: #{tpu_custom_call.1} parent=0
    #allocation2 [shape = 'u8[24576]{0}', space=vmem, size = 0x6000, scoped, tag = 'input window, operand 0']
    #allocation3 [shape = 's32[2]{0}', space=sflag, size = 0x8, scoped, tag = 'scoped memory for tpu_custom_call.1']
    #allocation4 [shape = 's32[2]{0}', space=sflag, size = 0x8, scoped, tag = 'scoped memory for tpu_custom_call.1']
    #allocation5 [shape = 'u8[331776]{0}', space=vmem, size = 0x51000, scoped, tag = 'input window, operand 1, single buffered']
    #allocation6 [shape = 's32[1]{0}', space=sflag, size = 0x4, scoped, tag = 'scoped memory for tpu_custom_call.1']
    #allocation7 [shape = 'u8[16384]{0}', space=vmem, size = 0x4000, scoped, tag = 'input window, operand 2, single buffered']
    #allocation8 [shape = 'u8[32768]{0}', space=vmem, size = 0x8000, scoped, tag = 'output window, operand 0']
    %8 = vsyncpa [#allocation3], 0
    %s9 = scalar_lea.sflag [#allocation3], 1
    %10 = vsyncpa %s9, 0
    %11 = vsyncpa [#allocation6], 0
    %12 = vsyncpa [#allocation4], 0
    %s13 = scalar_lea.sflag [#allocation4], 1
    %14 = vsyncpa %s13, 0
    loop: start=0, step=1, limit=4
    $region2: #{tpu_custom_call.1} parent=1 // loop_pre_header
      _
    $region3: #{tpu_custom_call.1} parent=1 // loop_header
      %s16 = sphi 0, %s20
      %p17 = scmp.ge.s32.totalorder %s16, 4
      %s26 = sphi 0, %s28
      %s29 = sphi 0, %s26
      %s30 = sphi 0, %s29
      %s46 = sphi 0, %s30
      %s50 = sphi 0, %s50
      %s52 = sphi 0, %s50
      %s53 = sphi 0, %s52
      %s67 = sphi 0, %s53
      %s71 = sphi 0, %s71
      %s73 = sphi 0, %s71
      %s74 = sphi 0, %s73
      %s88 = sphi 0, %s74
      %s94 = sphi 0, %s96
      %s97 = sphi 0, %s94
      %s98 = sphi 0, %s97
      %s114 = sphi 0, %s98
    $region4: #{tpu_custom_call.1} parent=1 // loop_header_branch
      %19 = sbr.rel (%p17) target = $region8
    $region5: #{tpu_custom_call.1} parent=1 // loop_body
      %s21 = ssub.s32 %s16, 1
      %s22 = ssub.s32 %s16, 2
      %s23 = sadd.s32 %s16, 1
      %s24 = ssub.s32 %s16, %s23
      %p25 = scmp.eq.s32.totalorder %s24, 0
      %s27 = sadd.s32 %s26, 1
      %s28 = scalar_select %p25, %s26, %s27
      %p31 = pneg %p25
      %p32 = scmp.eq.s32.totalorder %s16, 1
      %p33 = por %p31, %p32
      %p34 = scmp.ne.s32.totalorder %s26, %s29
      %p35 = scmp.eq.s32.totalorder %s16, 0
      %p36 = por %p34, %p35
      %p37 = scmp.ne.s32.totalorder %s26, %s29
      %p38 = scmp.eq.s32.totalorder %s21, 1
      %p39 = por %p37, %p38
      %p40 = scmp.ne.s32.totalorder %s29, %s30
      %p41 = scmp.eq.s32.totalorder %s21, 0
      %p42 = por %p40, %p41
      %p43 = scmp.ne.s32.totalorder %s29, %s30
      %p44 = scmp.eq.s32.totalorder %s22, 1
      %p45 = por %p43, %p44
      %p47 = scmp.ne.s32.totalorder %s30, %s46
      %p48 = scmp.eq.s32.totalorder %s22, 0
      %p49 = por %p47, %p48
      %s51 = sadd.s32 %s50, 1
      %p54 = scmp.eq.s32.totalorder %s16, 1
      %p55 = scmp.ne.s32.totalorder %s50, %s52
      %p56 = scmp.eq.s32.totalorder %s16, 0
      %p57 = por %p55, %p56
      %p58 = scmp.ne.s32.totalorder %s50, %s52
      %p59 = scmp.eq.s32.totalorder %s21, 1
      %p60 = por %p58, %p59
      %p61 = scmp.ne.s32.totalorder %s52, %s53
      %p62 = scmp.eq.s32.totalorder %s21, 0
      %p63 = por %p61, %p62
      %p64 = scmp.ne.s32.totalorder %s52, %s53
      %p65 = scmp.eq.s32.totalorder %s22, 1
      %p66 = por %p64, %p65
      %p68 = scmp.ne.s32.totalorder %s53, %s67
      %p69 = scmp.eq.s32.totalorder %s22, 0
      %p70 = por %p68, %p69
      %s72 = sadd.s32 %s71, 1
      %p75 = scmp.eq.s32.totalorder %s16, 1
      %p76 = scmp.ne.s32.totalorder %s71, %s73
      %p77 = scmp.eq.s32.totalorder %s16, 0
      %p78 = por %p76, %p77
      %p79 = scmp.ne.s32.totalorder %s71, %s73
      %p80 = scmp.eq.s32.totalorder %s21, 1
      %p81 = por %p79, %p80
      %p82 = scmp.ne.s32.totalorder %s73, %s74
      %p83 = scmp.eq.s32.totalorder %s21, 0
      %p84 = por %p82, %p83
      %p85 = scmp.ne.s32.totalorder %s73, %s74
      %p86 = scmp.eq.s32.totalorder %s22, 1
      %p87 = por %p85, %p86
      %p89 = scmp.ne.s32.totalorder %s74, %s88
      %p90 = scmp.eq.s32.totalorder %s22, 0
      %p91 = por %p89, %p90
      %s92 = ssub.s32 %s16, %s23
      %p93 = scmp.eq.s32.totalorder %s92, 0
      %s95 = sadd.s32 %s94, 1
      %s96 = scalar_select %p93, %s94, %s95
      %p99 = pneg %p93
      %p100 = scmp.eq.s32.totalorder %s16, 1
      %p101 = por %p99, %p100
      %p102 = scmp.ne.s32.totalorder %s94, %s97
      %p103 = scmp.eq.s32.totalorder %s16, 0
      %p104 = por %p102, %p103
      %p105 = scmp.ne.s32.totalorder %s94, %s97
      %p106 = scmp.eq.s32.totalorder %s21, 1
      %p107 = por %p105, %p106
      %p108 = scmp.ne.s32.totalorder %s97, %s98
      %p109 = scmp.eq.s32.totalorder %s21, 0
      %p110 = por %p108, %p109
      %p111 = scmp.ne.s32.totalorder %s97, %s98
      %p112 = scmp.eq.s32.totalorder %s22, 1
      %p113 = por %p111, %p112
      %p115 = scmp.ne.s32.totalorder %s98, %s114
      %p116 = scmp.eq.s32.totalorder %s22, 0
      %p117 = por %p115, %p116
      %p118 = scmp.le.s32.totalorder 1, %s16
      %p119 = scmp.lt.s32.totalorder %s16, 3
      %p120 = pnand %p118, %p119
      %p121 = pneg %p120
      // Predicated region
      $region9: #{tpu_custom_call.1} parent=5 // pred_check
        _
      $region10: #{tpu_custom_call.1} parent=5 // pred_check_branch
        %123 = sbr.rel (%p120) target = $region12
      $region11: #{tpu_custom_call.1} parent=5 // pred_region
        %s124 = ssub.s32 %s16, 1
        // Predicated region
        $region13: #{tpu_custom_call.1} parent=11 // pred_check
          %p125 = pneg %p63
        $region14: #{tpu_custom_call.1} parent=11 // pred_check_branch
          %127 = sbr.rel (%p125) target = $region16
        $region15: #{tpu_custom_call.1} parent=11 // pred_region
          %s129 = ssub.s32 10368, 10368
          %130 = vsyncadd [#allocation6], %s129
          %s131 = sshll.u32 [#allocation5], 4
          %s132 = int_to_ptr.vmem [resolvable:$true] %s131
          %137 = dma.hbm_to_vmem [thread:$0]  %s1, 10368, %s132, [#allocation6], 1152, 1152, 72
        $region16: #{tpu_custom_call.1} parent=11 // pred_fallthru
          _
        // Predicated region
        $region17: #{tpu_custom_call.1} parent=11 // pred_check
          %p138 = pneg %p84
        $region18: #{tpu_custom_call.1} parent=11 // pred_check_branch
          %140 = sbr.rel (%p138) target = $region20
        $region19: #{tpu_custom_call.1} parent=11 // pred_region
          %s142 = ssub.s32 512, 512
          %143 = vsyncadd [#allocation6], %s142
          %s144 = sshll.u32 [#allocation7], 4
          %s145 = int_to_ptr.vmem [resolvable:$true] %s144
          %150 = dma.hbm_to_vmem [thread:$0]  %s2, 512, %s145, [#allocation6], 256, 256, 16
        $region20: #{tpu_custom_call.1} parent=11 // pred_fallthru
          _
      $region12: #{tpu_custom_call.1} parent=5 // pred_fallthru
        _
      %p151 = scmp.lt.s32.totalorder %s16, 2
      // Predicated region
      $region21: #{tpu_custom_call.1} parent=5 // pred_check
        %p152 = pneg %p151
      $region22: #{tpu_custom_call.1} parent=5 // pred_check_branch
        %154 = sbr.rel (%p152) target = $region24
      $region23: #{tpu_custom_call.1} parent=5 // pred_region
        // Predicated region
        $region25: #{tpu_custom_call.1} parent=23 // pred_check
          %p155 = pneg %p36
        $region26: #{tpu_custom_call.1} parent=23 // pred_check_branch
          %157 = sbr.rel (%p155) target = $region28
        $region27: #{tpu_custom_call.1} parent=23 // pred_region
          %s158 = sand.u32 %s26, 1
          %s159 = scalar_lea.sflag [#allocation3], %s158
          %s160 = sand.u32 %s26, 1
          %s161 = smul.addr %s160, 24
          %s162 = scalar_lea.vmem [#allocation2], %s161
          %s164 = ssub.s32 384, 384
          %165 = vsyncadd %s159, %s164
          %s166 = smul.addr %s16, 3
          %s167 = smul.addr %s166, 128
          %s168 = scalar_lea.hbm %s0, %s167
          %s169 = sshll.u32 %s162, 4
          %s170 = int_to_ptr.vmem [resolvable:$true] %s169
          %175 = dma.hbm_to_vmem [thread:$0]  %s168, 384, %s170, %s159, 128, 128, 8
        $region28: #{tpu_custom_call.1} parent=23 // pred_fallthru
          _
      $region24: #{tpu_custom_call.1} parent=5 // pred_fallthru
        _
      %p176 = scmp.le.s32.totalorder 1, %s16
      %p177 = scmp.lt.s32.totalorder %s16, 3
      %p178 = pnand %p176, %p177
      %p179 = pneg %p178
      // Predicated region
      $region29: #{tpu_custom_call.1} parent=5 // pred_check
        _
      $region30: #{tpu_custom_call.1} parent=5 // pred_check_branch
        %181 = sbr.rel (%p178) target = $region32
      $region31: #{tpu_custom_call.1} parent=5 // pred_region
        %s182 = ssub.s32 %s16, 1
        %s183 = sand.u32 %s29, 1
        %s184 = scalar_lea.sflag [#allocation3], %s183
        %s185 = sand.u32 %s29, 1
        %s186 = smul.addr %s185, 24
        %s187 = scalar_lea.vmem [#allocation2], %s186
        // Predicated region
        $region33: #{tpu_custom_call.1} parent=31 // pred_check
          %p188 = pneg %p42
        $region34: #{tpu_custom_call.1} parent=31 // pred_check_branch
          %190 = sbr.rel (%p188) target = $region36
        $region35: #{tpu_custom_call.1} parent=31 // pred_region
          %191 = dma.done %s184, 384
        $region36: #{tpu_custom_call.1} parent=31 // pred_fallthru
          _
        // Predicated region
        $region37: #{tpu_custom_call.1} parent=31 // pred_check
          %p192 = pneg %p63
        $region38: #{tpu_custom_call.1} parent=31 // pred_check_branch
          %194 = sbr.rel (%p192) target = $region40
        $region39: #{tpu_custom_call.1} parent=31 // pred_region
          %195 = dma.done [#allocation6], 10368
        $region40: #{tpu_custom_call.1} parent=31 // pred_fallthru
          _
        // Predicated region
        $region41: #{tpu_custom_call.1} parent=31 // pred_check
          %p196 = pneg %p84
        $region42: #{tpu_custom_call.1} parent=31 // pred_check_branch
          %198 = sbr.rel (%p196) target = $region44
        $region43: #{tpu_custom_call.1} parent=31 // pred_region
          %199 = dma.done [#allocation6], 512
        $region44: #{tpu_custom_call.1} parent=31 // pred_fallthru
          _
        %s200 = sand.u32 %s29, 1
        %s201 = scalar_lea.sflag [#allocation3], %s200
        %s202 = sand.u32 %s29, 1
        %s203 = smul.addr %s202, 24
        %s204 = scalar_lea.vmem [#allocation2], %s203
        %p205 = pneg %p42
        %p206 = pneg %p39
        %p207 = pneg %p63
        %p208 = pneg %p60
        %p209 = pneg %p84
        %p210 = pneg %p81
        %p211 = pneg %p110
        %p212 = pneg %p107
        %s213 = sand.u32 %s97, 1
        %s214 = scalar_lea.sflag [#allocation4], %s213
        %s215 = sand.u32 %s97, 1
        %s216 = smul.addr %s215, 32
        %s217 = scalar_lea.vmem [#allocation8], %s216
        %v218 = vld [vmem:[%s187] sm:$0xff]
        %v219 = vld [vmem:[%s187 + $0x8] sm:$0xff]
        %v220 = vld [vmem:[%s187 + $0x10] sm:$0x3]
        %v221 = vld [vmem:[#allocation5] sm:$0xff]
        %v222 = vld [vmem:[#allocation5 + $0x8] sm:$0xff]
        %v223 = vld [vmem:[#allocation5 + $0x10] sm:$0xff]
        %v224 = vld [vmem:[#allocation5 + $0x18] sm:$0xff]
        %v225 = vld [vmem:[#allocation5 + $0x20] sm:$0xff]
        %v226 = vld [vmem:[#allocation5 + $0x28] sm:$0xff]
        %v227 = vld [vmem:[#allocation5 + $0x30] sm:$0xff]
        %v228 = vld [vmem:[#allocation5 + $0x38] sm:$0xff]
        %v229 = vld [vmem:[#allocation5 + $0x40] sm:$0xff]
        %v230 = vld [vmem:[#allocation5 + $0x48] sm:$0xff]
        %v231 = vld [vmem:[#allocation5 + $0x50] sm:$0xff]
        %v232 = vld [vmem:[#allocation5 + $0x58] sm:$0xff]
        %v233 = vld [vmem:[#allocation5 + $0x60] sm:$0xff]
        %v234 = vld [vmem:[#allocation5 + $0x68] sm:$0xff]
        %v235 = vld [vmem:[#allocation5 + $0x70] sm:$0xff]
        %v236 = vld [vmem:[#allocation5 + $0x78] sm:$0xff]
        %v237 = vld [vmem:[#allocation5 + $0x80] sm:$0xff]
        %v238 = vld [vmem:[#allocation5 + $0x88] sm:$0xff]
        %v239 = vld [vmem:[#allocation5 + $0x90] sm:$0xff]
        %v240 = vld [vmem:[#allocation5 + $0x98] sm:$0xff]
        %v241 = vld [vmem:[#allocation5 + $0xa0] sm:$0xff]
        %v242 = vld [vmem:[#allocation5 + $0xa8] sm:$0xff]
        %v243 = vld [vmem:[#allocation5 + $0xb0] sm:$0xff]
        %v244 = vld [vmem:[#allocation5 + $0xb8] sm:$0xff]
        %v245 = vld [vmem:[#allocation5 + $0xc0] sm:$0xff]
        %v246 = vld [vmem:[#allocation5 + $0xc8] sm:$0xff]
        %v247 = vld [vmem:[#allocation5 + $0xd0] sm:$0xff]
        %v248 = vld [vmem:[#allocation5 + $0xd8] sm:$0xff]
        %v249 = vld [vmem:[#allocation5 + $0xe0] sm:$0xff]
        %v250 = vld [vmem:[#allocation5 + $0xe8] sm:$0xff]
        %v251 = vld [vmem:[#allocation5 + $0xf0] sm:$0xff]
        %v252 = vld [vmem:[#allocation5 + $0xf8] sm:$0xff]
        %v253 = vld [vmem:[#allocation5 + $0x100] sm:$0xff]
        %v254 = vld [vmem:[#allocation5 + $0x108] sm:$0xff]
        %v255 = vld [vmem:[#allocation5 + $0x110] sm:$0xff]
        %v256 = vld [vmem:[#allocation5 + $0x118] sm:$0xff]
        %v257 = vld [vmem:[#allocation5 + $0x120] sm:$0xff]
        %v258 = vld [vmem:[#allocation5 + $0x128] sm:$0xff]
        %v259 = vld [vmem:[#allocation5 + $0x130] sm:$0xff]
        %v260 = vld [vmem:[#allocation5 + $0x138] sm:$0xff]
        %v261 = vld [vmem:[#allocation5 + $0x140] sm:$0xff]
        %v262 = vld [vmem:[#allocation5 + $0x148] sm:$0xff]
        %v263 = vld [vmem:[#allocation5 + $0x150] sm:$0xff]
        %v264 = vld [vmem:[#allocation5 + $0x158] sm:$0xff]
        %v265 = vld [vmem:[#allocation5 + $0x160] sm:$0xff]
        %v266 = vld [vmem:[#allocation5 + $0x168] sm:$0xff]
        %v267 = vld [vmem:[#allocation5 + $0x170] sm:$0xff]
        %v268 = vld [vmem:[#allocation5 + $0x178] sm:$0xff]
        %v269 = vld [vmem:[#allocation5 + $0x180] sm:$0xff]
        %v270 = vld [vmem:[#allocation5 + $0x188] sm:$0xff]
        %v271 = vld [vmem:[#allocation5 + $0x190] sm:$0xff]
        %v272 = vld [vmem:[#allocation5 + $0x198] sm:$0xff]
        %v273 = vld [vmem:[#allocation5 + $0x1a0] sm:$0xff]
        %v274 = vld [vmem:[#allocation5 + $0x1a8] sm:$0xff]
        %v275 = vld [vmem:[#allocation5 + $0x1b0] sm:$0xff]
        %v276 = vld [vmem:[#allocation5 + $0x1b8] sm:$0xff]
        %v277 = vld [vmem:[#allocation5 + $0x1c0] sm:$0xff]
        %v278 = vld [vmem:[#allocation5 + $0x1c8] sm:$0xff]
        %v279 = vld [vmem:[#allocation5 + $0x1d0] sm:$0xff]
        %v280 = vld [vmem:[#allocation5 + $0x1d8] sm:$0xff]
        %v281 = vld [vmem:[#allocation5 + $0x1e0] sm:$0xff]
        %v282 = vld [vmem:[#allocation5 + $0x1e8] sm:$0xff]
        %v283 = vld [vmem:[#allocation5 + $0x1f0] sm:$0xff]
        %v284 = vld [vmem:[#allocation5 + $0x1f8] sm:$0xff]
        %v285 = vld [vmem:[#allocation5 + $0x200] sm:$0xff]
        %v286 = vld [vmem:[#allocation5 + $0x208] sm:$0xff]
        %v287 = vld [vmem:[#allocation5 + $0x210] sm:$0xff]
        %v288 = vld [vmem:[#allocation5 + $0x218] sm:$0xff]
        %v289 = vld [vmem:[#allocation5 + $0x220] sm:$0xff]
        %v290 = vld [vmem:[#allocation5 + $0x228] sm:$0xff]
        %v291 = vld [vmem:[#allocation5 + $0x230] sm:$0xff]
        %v292 = vld [vmem:[#allocation5 + $0x238] sm:$0xff]
        %v293 = vld [vmem:[#allocation5 + $0x240] sm:$0xff]
        %v294 = vld [vmem:[#allocation5 + $0x248] sm:$0xff]
        %v295 = vld [vmem:[#allocation5 + $0x250] sm:$0xff]
        %v296 = vld [vmem:[#allocation5 + $0x258] sm:$0xff]
        %v297 = vld [vmem:[#allocation5 + $0x260] sm:$0xff]
        %v298 = vld [vmem:[#allocation5 + $0x268] sm:$0xff]
        %v299 = vld [vmem:[#allocation5 + $0x270] sm:$0xff]
        %v300 = vld [vmem:[#allocation5 + $0x278] sm:$0xff]
        %v301 = vld [vmem:[#allocation5 + $0x280] sm:$0xff]
        %vm302 = vcmask 588800
        %v304 = vsel %vm302, %v218, 0
        %v307 = vsel %vm302, %v219, 0
        %v310 = vsel %vm302, %v220, 0
        %312 = vmatprep.subr.mxu0 %v222
        %313 = vmatpush1.msra.mxu0 %v221
        %314 = vmatprep.subr.mxu0 %v231
        %315 = vmatpush1.msra.mxu0 %v230
        %316 = vmatprep.subr.mxu0 %v240
        %317 = vmatpush1.msra.mxu0 %v239
        %318 = vmatprep.subr.mxu0 %v249
        %319 = vmatpush1.msra.mxu0 %v248
        %320 = vmatprep.subr.mxu0 %v258
        %321 = vmatpush1.msra.mxu0 %v257
        %322 = vmatprep.subr.mxu0 %v267
        %323 = vmatpush1.msra.mxu0 %v266
        %324 = vmatprep.subr.mxu0 %v276
        %325 = vmatpush1.msra.mxu0 %v275
        %326 = vmatprep.subr.mxu0 %v285
        %327 = vmatpush1.msra.mxu0 %v284
        %328 = vmatprep.subr.mxu0 %v294
        %329 = vmatpush1.msra.mxu0 %v293
        %330 = vmatprep.subr.mxu0 0.0
        %331 = vmatpush1.msra.mxu0 0.0
        %332 = vmatprep.subr.mxu0 0.0
        %333 = vmatpush1.msra.mxu0 0.0
        %334 = vmatprep.subr.mxu0 0.0
        %335 = vmatpush1.msra.mxu0 0.0
        %336 = vmatprep.subr.mxu0 0.0
        %337 = vmatpush1.msra.mxu0 0.0
        %338 = vmatprep.subr.mxu0 0.0
        %339 = vmatpush1.msra.mxu0 0.0
        %340 = vmatprep.subr.mxu0 0.0
        %341 = vmatpush1.msra.mxu0 0.0
        %342 = vmatprep.subr.mxu0 0.0
        %343 = vmatpush1.msra.mxu0 0.0
        %344 = vmatprep.subr.mxu0 0.0
        %345 = vmatpush1.msra.mxu0 0.0
        %346 = vmatprep.subr.mxu0 0.0
        %347 = vmatpush1.msra.mxu0 0.0
        %348 = vmatprep.subr.mxu0 0.0
        %349 = vmatpush1.msra.mxu0 0.0
        %350 = vmatprep.subr.mxu0 0.0
        %351 = vmatpush1.msra.mxu0 0.0
        %352 = vmatprep.subr.mxu0 0.0
        %353 = vmatpush1.msra.mxu0 0.0
        %354 = vmatprep.subr.mxu0 0.0
        %355 = vmatpush1.msra.mxu0 0.0
        %356 = vmatprep.subr.mxu0 0.0
        %357 = vmatpush1.msra.mxu0 0.0
        %358 = vmatprep.subr.mxu0 0.0
        %359 = vmatpush1.msra.mxu0 0.0
        %360 = vmatprep.subr.mxu0 0.0
        %361 = vmatpush1.msra.mxu0 0.0
        %362 = vmatprep.subr.mxu0 0.0
        %363 = vmatpush1.msra.mxu0 0.0
        %364 = vmatprep.subr.mxu0 0.0
        %365 = vmatpush1.msra.mxu0 0.0
        %366 = vmatprep.subr.mxu0 0.0
        %367 = vmatpush1.msra.mxu0 0.0
        %368 = vmatprep.subr.mxu0 0.0
        %369 = vmatpush1.msra.mxu0 0.0
        %370 = vmatprep.subr.mxu0 0.0
        %371 = vmatpush1.msra.mxu0 0.0
        %372 = vmatprep.subr.mxu0 0.0
        %373 = vmatpush1.msra.mxu0 0.0
        %374 = vmatprep.subr.mxu0 0.0
        %375 = vmatpush1.msra.mxu0 0.0
        %376 = vmatprep.mubr.f32.mxu0 0.0
        %377 = vmatmul.mubr.f32.gmra.mrb[0].mxu0 %v304
        %v378 = vpop.f32.mrb[0].mxu0
        %v379 = vadd.f32 0.0, %v378
        %v380 = vpop.f32.mrb[0].mxu0
        %v381 = vadd.f32 0.0, %v380
        %382 = vmatprep.mubr.f32.mxu0 0.0
        %383 = vmatmul.mubr.f32.gmra.mrb[0].mxu0 %v307
        %v384 = vpop.f32.mrb[0].mxu0
        %v385 = vadd.f32 0.0, %v384
        %v386 = vpop.f32.mrb[0].mxu0
        %v387 = vadd.f32 0.0, %v386
        %388 = vmatprep.mubr.f32.mxu0 0.0
        %389 = vmatmul.mubr.f32.gmra.mrb[0].mxu0 %v310
        %v390 = vpop.f32.mrb[0].mxu0
        %v391 = vadd.f32 0.0, %v390
        %v392 = vpop.f32.mrb[0].mxu0
        %v393 = vadd.f32 0.0, %v392
        %394 = vdwg.mxu0
        %395 = vmatprep.subr.mxu0 %v224
        %396 = vmatpush1.msra.mxu0 %v223
        %397 = vmatprep.subr.mxu0 %v233
        %398 = vmatpush1.msra.mxu0 %v232
        %399 = vmatprep.subr.mxu0 %v242
        %400 = vmatpush1.msra.mxu0 %v241
        %401 = vmatprep.subr.mxu0 %v251
        %402 = vmatpush1.msra.mxu0 %v250
        %403 = vmatprep.subr.mxu0 %v260
        %404 = vmatpush1.msra.mxu0 %v259
        %405 = vmatprep.subr.mxu0 %v269
        %406 = vmatpush1.msra.mxu0 %v268
        %407 = vmatprep.subr.mxu0 %v278
        %408 = vmatpush1.msra.mxu0 %v277
        %409 = vmatprep.subr.mxu0 %v287
        %410 = vmatpush1.msra.mxu0 %v286
        %411 = vmatprep.subr.mxu0 %v296
        %412 = vmatpush1.msra.mxu0 %v295
        %413 = vmatprep.subr.mxu0 0.0
        %414 = vmatpush1.msra.mxu0 0.0
        %415 = vmatprep.subr.mxu0 0.0
        %416 = vmatpush1.msra.mxu0 0.0
        %417 = vmatprep.subr.mxu0 0.0
        %418 = vmatpush1.msra.mxu0 0.0
        %419 = vmatprep.subr.mxu0 0.0
        %420 = vmatpush1.msra.mxu0 0.0
        %421 = vmatprep.subr.mxu0 0.0
        %422 = vmatpush1.msra.mxu0 0.0
        %423 = vmatprep.subr.mxu0 0.0
        %424 = vmatpush1.msra.mxu0 0.0
        %425 = vmatprep.subr.mxu0 0.0
        %426 = vmatpush1.msra.mxu0 0.0
        %427 = vmatprep.subr.mxu0 0.0
        %428 = vmatpush1.msra.mxu0 0.0
        %429 = vmatprep.subr.mxu0 0.0
        %430 = vmatpush1.msra.mxu0 0.0
        %431 = vmatprep.subr.mxu0 0.0
        %432 = vmatpush1.msra.mxu0 0.0
        %433 = vmatprep.subr.mxu0 0.0
        %434 = vmatpush1.msra.mxu0 0.0
        %435 = vmatprep.subr.mxu0 0.0
        %436 = vmatpush1.msra.mxu0 0.0
        %437 = vmatprep.subr.mxu0 0.0
        %438 = vmatpush1.msra.mxu0 0.0
        %439 = vmatprep.subr.mxu0 0.0
        %440 = vmatpush1.msra.mxu0 0.0
        %441 = vmatprep.subr.mxu0 0.0
        %442 = vmatpush1.msra.mxu0 0.0
        %443 = vmatprep.subr.mxu0 0.0
        %444 = vmatpush1.msra.mxu0 0.0
        %445 = vmatprep.subr.mxu0 0.0
        %446 = vmatpush1.msra.mxu0 0.0
        %447 = vmatprep.subr.mxu0 0.0
        %448 = vmatpush1.msra.mxu0 0.0
        %449 = vmatprep.subr.mxu0 0.0
        %450 = vmatpush1.msra.mxu0 0.0
        %451 = vmatprep.subr.mxu0 0.0
        %452 = vmatpush1.msra.mxu0 0.0
        %453 = vmatprep.subr.mxu0 0.0
        %454 = vmatpush1.msra.mxu0 0.0
        %455 = vmatprep.subr.mxu0 0.0
        %456 = vmatpush1.msra.mxu0 0.0
        %457 = vmatprep.subr.mxu0 0.0
        %458 = vmatpush1.msra.mxu0 0.0
        %459 = vmatprep.mubr.f32.mxu0 0.0
        %460 = vmatmul.mubr.f32.gmra.mrb[0].mxu0 %v304
        %v461 = vpop.f32.mrb[0].mxu0
        %v462 = vadd.f32 0.0, %v461
        %v463 = vpop.f32.mrb[0].mxu0
        %v464 = vadd.f32 0.0, %v463
        %465 = vmatprep.mubr.f32.mxu0 0.0
        %466 = vmatmul.mubr.f32.gmra.mrb[0].mxu0 %v307
        %v467 = vpop.f32.mrb[0].mxu0
        %v468 = vadd.f32 0.0, %v467
        %v469 = vpop.f32.mrb[0].mxu0
        %v470 = vadd.f32 0.0, %v469
        %471 = vmatprep.mubr.f32.mxu0 0.0
        %472 = vmatmul.mubr.f32.gmra.mrb[0].mxu0 %v310
        %v473 = vpop.f32.mrb[0].mxu0
        %v474 = vadd.f32 0.0, %v473
        %v475 = vpop.f32.mrb[0].mxu0
        %v476 = vadd.f32 0.0, %v475
        %477 = vdwg.mxu0
        %478 = vmatprep.subr.mxu0 %v226
        %479 = vmatpush1.msra.mxu0 %v225
        %480 = vmatprep.subr.mxu0 %v235
        %481 = vmatpush1.msra.mxu0 %v234
        %482 = vmatprep.subr.mxu0 %v244
        %483 = vmatpush1.msra.mxu0 %v243
        %484 = vmatprep.subr.mxu0 %v253
        %485 = vmatpush1.msra.mxu0 %v252
        %486 = vmatprep.subr.mxu0 %v262
        %487 = vmatpush1.msra.mxu0 %v261
        %488 = vmatprep.subr.mxu0 %v271
        %489 = vmatpush1.msra.mxu0 %v270
        %490 = vmatprep.subr.mxu0 %v280
        %491 = vmatpush1.msra.mxu0 %v279
        %492 = vmatprep.subr.mxu0 %v289
        %493 = vmatpush1.msra.mxu0 %v288
        %494 = vmatprep.subr.mxu0 %v298
        %495 = vmatpush1.msra.mxu0 %v297
        %496 = vmatprep.subr.mxu0 0.0
        %497 = vmatpush1.msra.mxu0 0.0
        %498 = vmatprep.subr.mxu0 0.0
        %499 = vmatpush1.msra.mxu0 0.0
        %500 = vmatprep.subr.mxu0 0.0
        %501 = vmatpush1.msra.mxu0 0.0
        %502 = vmatprep.subr.mxu0 0.0
        %503 = vmatpush1.msra.mxu0 0.0
        %504 = vmatprep.subr.mxu0 0.0
        %505 = vmatpush1.msra.mxu0 0.0
        %506 = vmatprep.subr.mxu0 0.0
        %507 = vmatpush1.msra.mxu0 0.0
        %508 = vmatprep.subr.mxu0 0.0
        %509 = vmatpush1.msra.mxu0 0.0
        %510 = vmatprep.subr.mxu0 0.0
        %511 = vmatpush1.msra.mxu0 0.0
        %512 = vmatprep.subr.mxu0 0.0
        %513 = vmatpush1.msra.mxu0 0.0
        %514 = vmatprep.subr.mxu0 0.0
        %515 = vmatpush1.msra.mxu0 0.0
        %516 = vmatprep.subr.mxu0 0.0
        %517 = vmatpush1.msra.mxu0 0.0
        %518 = vmatprep.subr.mxu0 0.0
        %519 = vmatpush1.msra.mxu0 0.0
        %520 = vmatprep.subr.mxu0 0.0
        %521 = vmatpush1.msra.mxu0 0.0
        %522 = vmatprep.subr.mxu0 0.0
        %523 = vmatpush1.msra.mxu0 0.0
        %524 = vmatprep.subr.mxu0 0.0
        %525 = vmatpush1.msra.mxu0 0.0
        %526 = vmatprep.subr.mxu0 0.0
        %527 = vmatpush1.msra.mxu0 0.0
        %528 = vmatprep.subr.mxu0 0.0
        %529 = vmatpush1.msra.mxu0 0.0
        %530 = vmatprep.subr.mxu0 0.0
        %531 = vmatpush1.msra.mxu0 0.0
        %532 = vmatprep.subr.mxu0 0.0
        %533 = vmatpush1.msra.mxu0 0.0
        %534 = vmatprep.subr.mxu0 0.0
        %535 = vmatpush1.msra.mxu0 0.0
        %536 = vmatprep.subr.mxu0 0.0
        %537 = vmatpush1.msra.mxu0 0.0
        %538 = vmatprep.subr.mxu0 0.0
        %539 = vmatpush1.msra.mxu0 0.0
        %540 = vmatprep.subr.mxu0 0.0
        %541 = vmatpush1.msra.mxu0 0.0
        %542 = vmatprep.mubr.f32.mxu0 0.0
        %543 = vmatmul.mubr.f32.gmra.mrb[0].mxu0 %v304
        %v544 = vpop.f32.mrb[0].mxu0
        %v545 = vadd.f32 0.0, %v544
        %v546 = vpop.f32.mrb[0].mxu0
        %v547 = vadd.f32 0.0, %v546
        %548 = vmatprep.mubr.f32.mxu0 0.0
        %549 = vmatmul.mubr.f32.gmra.mrb[0].mxu0 %v307
        %v550 = vpop.f32.mrb[0].mxu0
        %v551 = vadd.f32 0.0, %v550
        %v552 = vpop.f32.mrb[0].mxu0
        %v553 = vadd.f32 0.0, %v552
        %554 = vmatprep.mubr.f32.mxu0 0.0
        %555 = vmatmul.mubr.f32.gmra.mrb[0].mxu0 %v310
        %v556 = vpop.f32.mrb[0].mxu0
        %v557 = vadd.f32 0.0, %v556
        %v558 = vpop.f32.mrb[0].mxu0
        %v559 = vadd.f32 0.0, %v558
        %560 = vdwg.mxu0
        %561 = vmatprep.subr.mxu0 %v228
        %562 = vmatpush1.msra.mxu0 %v227
        %563 = vmatprep.subr.mxu0 %v237
        %564 = vmatpush1.msra.mxu0 %v236
        %565 = vmatprep.subr.mxu0 %v246
        %566 = vmatpush1.msra.mxu0 %v245
        %567 = vmatprep.subr.mxu0 %v255
        %568 = vmatpush1.msra.mxu0 %v254
        %569 = vmatprep.subr.mxu0 %v264
        %570 = vmatpush1.msra.mxu0 %v263
        %571 = vmatprep.subr.mxu0 %v273
        %572 = vmatpush1.msra.mxu0 %v272
        %573 = vmatprep.subr.mxu0 %v282
        %574 = vmatpush1.msra.mxu0 %v281
        %575 = vmatprep.subr.mxu0 %v291
        %576 = vmatpush1.msra.mxu0 %v290
        %577 = vmatprep.subr.mxu0 %v300
        %578 = vmatpush1.msra.mxu0 %v299
        %579 = vmatprep.subr.mxu0 0.0
        %580 = vmatpush1.msra.mxu0 0.0
        %581 = vmatprep.subr.mxu0 0.0
        %582 = vmatpush1.msra.mxu0 0.0
        %583 = vmatprep.subr.mxu0 0.0
        %584 = vmatpush1.msra.mxu0 0.0
        %585 = vmatprep.subr.mxu0 0.0
        %586 = vmatpush1.msra.mxu0 0.0
        %587 = vmatprep.subr.mxu0 0.0
        %588 = vmatpush1.msra.mxu0 0.0
        %589 = vmatprep.subr.mxu0 0.0
        %590 = vmatpush1.msra.mxu0 0.0
        %591 = vmatprep.subr.mxu0 0.0
        %592 = vmatpush1.msra.mxu0 0.0
        %593 = vmatprep.subr.mxu0 0.0
        %594 = vmatpush1.msra.mxu0 0.0
        %595 = vmatprep.subr.mxu0 0.0
        %596 = vmatpush1.msra.mxu0 0.0
        %597 = vmatprep.subr.mxu0 0.0
        %598 = vmatpush1.msra.mxu0 0.0
        %599 = vmatprep.subr.mxu0 0.0
        %600 = vmatpush1.msra.mxu0 0.0
        %601 = vmatprep.subr.mxu0 0.0
        %602 = vmatpush1.msra.mxu0 0.0
        %603 = vmatprep.subr.mxu0 0.0
        %604 = vmatpush1.msra.mxu0 0.0
        %605 = vmatprep.subr.mxu0 0.0
        %606 = vmatpush1.msra.mxu0 0.0
        %607 = vmatprep.subr.mxu0 0.0
        %608 = vmatpush1.msra.mxu0 0.0
        %609 = vmatprep.subr.mxu0 0.0
        %610 = vmatpush1.msra.mxu0 0.0
        %611 = vmatprep.subr.mxu0 0.0
        %612 = vmatpush1.msra.mxu0 0.0
        %613 = vmatprep.subr.mxu0 0.0
        %614 = vmatpush1.msra.mxu0 0.0
        %615 = vmatprep.subr.mxu0 0.0
        %616 = vmatpush1.msra.mxu0 0.0
        %617 = vmatprep.subr.mxu0 0.0
        %618 = vmatpush1.msra.mxu0 0.0
        %619 = vmatprep.subr.mxu0 0.0
        %620 = vmatpush1.msra.mxu0 0.0
        %621 = vmatprep.subr.mxu0 0.0
        %622 = vmatpush1.msra.mxu0 0.0
        %623 = vmatprep.subr.mxu0 0.0
        %624 = vmatpush1.msra.mxu0 0.0
        %625 = vmatprep.mubr.f32.mxu0 0.0
        %626 = vmatmul.mubr.f32.gmra.mrb[0].mxu0 %v304
        %v627 = vpop.f32.mrb[0].mxu0
        %v628 = vadd.f32 0.0, %v627
        %v629 = vpop.f32.mrb[0].mxu0
        %v630 = vadd.f32 0.0, %v629
        %631 = vmatprep.mubr.f32.mxu0 0.0
        %632 = vmatmul.mubr.f32.gmra.mrb[0].mxu0 %v307
        %v633 = vpop.f32.mrb[0].mxu0
        %v634 = vadd.f32 0.0, %v633
        %v635 = vpop.f32.mrb[0].mxu0
        %v636 = vadd.f32 0.0, %v635
        %637 = vmatprep.mubr.f32.mxu0 0.0
        %638 = vmatmul.mubr.f32.gmra.mrb[0].mxu0 %v310
        %v639 = vpop.f32.mrb[0].mxu0
        %v640 = vadd.f32 0.0, %v639
        %v641 = vpop.f32.mrb[0].mxu0
        %v642 = vadd.f32 0.0, %v641
        %643 = vdwg.mxu0
        %644 = vmatprep.subr.mxu0 0.0
        %645 = vmatpush1.msra.mxu0 %v229
        %646 = vmatprep.subr.mxu0 0.0
        %647 = vmatpush1.msra.mxu0 %v238
        %648 = vmatprep.subr.mxu0 0.0
        %649 = vmatpush1.msra.mxu0 %v247
        %650 = vmatprep.subr.mxu0 0.0
        %651 = vmatpush1.msra.mxu0 %v256
        %652 = vmatprep.subr.mxu0 0.0
        %653 = vmatpush1.msra.mxu0 %v265
        %654 = vmatprep.subr.mxu0 0.0
        %655 = vmatpush1.msra.mxu0 %v274
        %656 = vmatprep.subr.mxu0 0.0
        %657 = vmatpush1.msra.mxu0 %v283
        %658 = vmatprep.subr.mxu0 0.0
        %659 = vmatpush1.msra.mxu0 %v292
        %660 = vmatprep.subr.mxu0 0.0
        %661 = vmatpush1.msra.mxu0 %v301
        %662 = vmatprep.subr.mxu0 0.0
        %663 = vmatpush1.msra.mxu0 0.0
        %664 = vmatprep.subr.mxu0 0.0
        %665 = vmatpush1.msra.mxu0 0.0
        %666 = vmatprep.subr.mxu0 0.0
        %667 = vmatpush1.msra.mxu0 0.0
        %668 = vmatprep.subr.mxu0 0.0
        %669 = vmatpush1.msra.mxu0 0.0
        %670 = vmatprep.subr.mxu0 0.0
        %671 = vmatpush1.msra.mxu0 0.0
        %672 = vmatprep.subr.mxu0 0.0
        %673 = vmatpush1.msra.mxu0 0.0
        %674 = vmatprep.subr.mxu0 0.0
        %675 = vmatpush1.msra.mxu0 0.0
        %676 = vmatprep.subr.mxu0 0.0
        %677 = vmatpush1.msra.mxu0 0.0
        %678 = vmatprep.subr.mxu0 0.0
        %679 = vmatpush1.msra.mxu0 0.0
        %680 = vmatprep.subr.mxu0 0.0
        %681 = vmatpush1.msra.mxu0 0.0
        %682 = vmatprep.subr.mxu0 0.0
        %683 = vmatpush1.msra.mxu0 0.0
        %684 = vmatprep.subr.mxu0 0.0
        %685 = vmatpush1.msra.mxu0 0.0
        %686 = vmatprep.subr.mxu0 0.0
        %687 = vmatpush1.msra.mxu0 0.0
        %688 = vmatprep.subr.mxu0 0.0
        %689 = vmatpush1.msra.mxu0 0.0
        %690 = vmatprep.subr.mxu0 0.0
        %691 = vmatpush1.msra.mxu0 0.0
        %692 = vmatprep.subr.mxu0 0.0
        %693 = vmatpush1.msra.mxu0 0.0
        %694 = vmatprep.subr.mxu0 0.0
        %695 = vmatpush1.msra.mxu0 0.0
        %696 = vmatprep.subr.mxu0 0.0
        %697 = vmatpush1.msra.mxu0 0.0
        %698 = vmatprep.subr.mxu0 0.0
        %699 = vmatpush1.msra.mxu0 0.0
        %700 = vmatprep.subr.mxu0 0.0
        %701 = vmatpush1.msra.mxu0 0.0
        %702 = vmatprep.subr.mxu0 0.0
        %703 = vmatpush1.msra.mxu0 0.0
        %704 = vmatprep.subr.mxu0 0.0
        %705 = vmatpush1.msra.mxu0 0.0
        %706 = vmatprep.subr.mxu0 0.0
        %707 = vmatpush1.msra.mxu0 0.0
        %708 = vmatprep.mubr.f32.mxu0 0.0
        %709 = vmatmul.mubr.f32.gmra.mrb[0].mxu0 %v304
        %v710 = vpop.f32.mrb[0].mxu0
        %v711 = vadd.f32 0.0, %v710
        %v712 = vpop.f32.mrb[0].mxu0
        %713 = vmatprep.mubr.f32.mxu0 0.0
        %714 = vmatmul.mubr.f32.gmra.mrb[0].mxu0 %v307
        %v715 = vpop.f32.mrb[0].mxu0
        %v716 = vadd.f32 0.0, %v715
        %v717 = vpop.f32.mrb[0].mxu0
        %718 = vmatprep.mubr.f32.mxu0 0.0
        %719 = vmatmul.mubr.f32.gmra.mrb[0].mxu0 %v310
        %v720 = vpop.f32.mrb[0].mxu0
        %v721 = vadd.f32 0.0, %v720
        %v722 = vpop.f32.mrb[0].mxu0
        %723 = vdwg.mxu0
        %vm728 = vcmask 1040384
        %v729 = vrot.slane %v464, 7
        %v730 = vrot.slane %v545, 7
        %v731 = vrot.slane %v470, 7
        %v732 = vsel %vm728, %v729, %v731
        %v733 = vrot.slane %v551, 7
        %v734 = vsel %vm728, %v730, %v733
        %735 = vrot.lane.b32.xlu0 %v729, 16
        %v736 = vpop.permute.xlu0 %735
        %737 = vrot.lane.b32.xlu0 %v730, 16
        %v738 = vpop.permute.xlu0 %737
        %739 = vrot.lane.b32.xlu0 %v732, 16
        %v740 = vpop.permute.xlu0 %739
        %741 = vrot.lane.b32.xlu0 %v734, 16
        %v742 = vpop.permute.xlu0 %741
        %743 = vrot.lane.b32.xlu0 %v731, 16
        %v744 = vpop.permute.xlu0 %743
        %745 = vrot.lane.b32.xlu0 %v733, 16
        %v746 = vpop.permute.xlu0 %745
        %vm747 = vcmask 130048
        %v748 = vsel %vm747, %v736, %v738
        %v749 = vsel %vm747, %v740, %v742
        %v750 = vsel %vm747, %v744, %v746
        %v760 = vmul.f32 %v379, %v736
        %v761 = vmul.f32 %v381, %v748
        %v762 = vmul.f32 %v462, %v738
        %v763 = vmul.f32 %v385, %v740
        %v764 = vmul.f32 %v387, %v749
        %v765 = vmul.f32 %v468, %v742
        %v766 = vmul.f32 %v391, %v744
        %v767 = vmul.f32 %v393, %v750
        %v768 = vmul.f32 %v474, %v746
        %v771 = vrot.slane %v547, 7
        %v772 = vrot.slane %v553, 7
        %v773 = vsel %vm728, %v771, %v772
        %v783 = vmul.f32 %v379, %v729
        %v784 = vmul.f32 %v381, %v730
        %v785 = vmul.f32 %v462, %v771
        %v786 = vmul.f32 %v385, %v732
        %v787 = vmul.f32 %v387, %v734
        %v788 = vmul.f32 %v468, %v773
        %v789 = vmul.f32 %v391, %v731
        %v790 = vmul.f32 %v393, %v733
        %v791 = vmul.f32 %v474, %v772
        %v792 = vmax.f32 %v760, %v783
        %v793 = vmax.f32 %v761, %v784
        %v794 = vmax.f32 %v762, %v785
        %v795 = vmax.f32 %v763, %v786
        %v796 = vmax.f32 %v764, %v787
        %v797 = vmax.f32 %v765, %v788
        %v798 = vmax.f32 %v766, %v789
        %v799 = vmax.f32 %v767, %v790
        %v800 = vmax.f32 %v768, %v791
        %801 = vrot.lane.b32.xlu0 %v729, 112
        %v802 = vpop.permute.xlu0 %801
        %803 = vrot.lane.b32.xlu0 %v730, 112
        %v804 = vpop.permute.xlu0 %803
        %805 = vrot.lane.b32.xlu0 %v771, 112
        %v806 = vpop.permute.xlu0 %805
        %807 = vrot.lane.b32.xlu0 %v732, 112
        %v808 = vpop.permute.xlu0 %807
        %809 = vrot.lane.b32.xlu0 %v734, 112
        %v810 = vpop.permute.xlu0 %809
        %811 = vrot.lane.b32.xlu0 %v773, 112
        %v812 = vpop.permute.xlu0 %811
        %813 = vrot.lane.b32.xlu0 %v731, 112
        %v814 = vpop.permute.xlu0 %813
        %815 = vrot.lane.b32.xlu0 %v733, 112
        %v816 = vpop.permute.xlu0 %815
        %817 = vrot.lane.b32.xlu0 %v772, 112
        %v818 = vpop.permute.xlu0 %817
        %vm819 = vcmask 916480
        %v820 = vsel %vm819, %v802, %v804
        %v821 = vsel %vm819, %v804, %v806
        %v822 = vsel %vm819, %v808, %v810
        %v823 = vsel %vm819, %v810, %v812
        %v824 = vsel %vm819, %v814, %v816
        %v825 = vsel %vm819, %v816, %v818
        %v835 = vmul.f32 %v379, %v820
        %v836 = vmul.f32 %v381, %v821
        %v837 = vmul.f32 %v462, %v806
        %v838 = vmul.f32 %v385, %v822
        %v839 = vmul.f32 %v387, %v823
        %v840 = vmul.f32 %v468, %v812
        %v841 = vmul.f32 %v391, %v824
        %v842 = vmul.f32 %v393, %v825
        %v843 = vmul.f32 %v474, %v818
        %v844 = vmax.f32 %v792, %v835
        %v845 = vmax.f32 %v793, %v836
        %v846 = vmax.f32 %v794, %v837
        %v847 = vmax.f32 %v795, %v838
        %v848 = vmax.f32 %v796, %v839
        %v849 = vmax.f32 %v797, %v840
        %v850 = vmax.f32 %v798, %v841
        %v851 = vmax.f32 %v799, %v842
        %v852 = vmax.f32 %v800, %v843
        %855 = vrot.lane.b32.xlu0 %v464, 16
        %v856 = vpop.permute.xlu0 %855
        %857 = vrot.lane.b32.xlu0 %v545, 16
        %v858 = vpop.permute.xlu0 %857
        %859 = vrot.lane.b32.xlu0 %v470, 16
        %v860 = vpop.permute.xlu0 %859
        %861 = vrot.lane.b32.xlu0 %v551, 16
        %v862 = vpop.permute.xlu0 %861
        %863 = vrot.lane.b32.xlu0 %v476, 16
        %v864 = vpop.permute.xlu0 %863
        %865 = vrot.lane.b32.xlu0 %v557, 16
        %v866 = vpop.permute.xlu0 %865
        %v867 = vsel %vm747, %v856, %v858
        %v868 = vsel %vm747, %v860, %v862
        %v869 = vsel %vm747, %v864, %v866
        %v879 = vmul.f32 %v379, %v856
        %v880 = vmul.f32 %v381, %v867
        %v881 = vmul.f32 %v462, %v858
        %v882 = vmul.f32 %v385, %v860
        %v883 = vmul.f32 %v387, %v868
        %v884 = vmul.f32 %v468, %v862
        %v885 = vmul.f32 %v391, %v864
        %v886 = vmul.f32 %v393, %v869
        %v887 = vmul.f32 %v474, %v866
        %v888 = vmax.f32 %v844, %v879
        %v889 = vmax.f32 %v845, %v880
        %v890 = vmax.f32 %v846, %v881
        %v891 = vmax.f32 %v847, %v882
        %v892 = vmax.f32 %v848, %v883
        %v893 = vmax.f32 %v849, %v884
        %v894 = vmax.f32 %v850, %v885
        %v895 = vmax.f32 %v851, %v886
        %v896 = vmax.f32 %v852, %v887
        %v897 = vmul.f32 %v379, %v464
        %v898 = vmul.f32 %v381, %v545
        %v899 = vmul.f32 %v462, %v547
        %v900 = vmul.f32 %v385, %v470
        %v901 = vmul.f32 %v387, %v551
        %v902 = vmul.f32 %v468, %v553
        %v903 = vmul.f32 %v391, %v476
        %v904 = vmul.f32 %v393, %v557
        %v905 = vmul.f32 %v474, %v559
        %v906 = vmax.f32 %v888, %v897
        %v907 = vmax.f32 %v889, %v898
        %v908 = vmax.f32 %v890, %v899
        %v909 = vmax.f32 %v891, %v900
        %v910 = vmax.f32 %v892, %v901
        %v911 = vmax.f32 %v893, %v902
        %v912 = vmax.f32 %v894, %v903
        %v913 = vmax.f32 %v895, %v904
        %v914 = vmax.f32 %v896, %v905
        %916 = vrot.lane.b32.xlu0 %v464, 112
        %v917 = vpop.permute.xlu0 %916
        %918 = vrot.lane.b32.xlu0 %v545, 112
        %v919 = vpop.permute.xlu0 %918
        %920 = vrot.lane.b32.xlu0 %v547, 112
        %v921 = vpop.permute.xlu0 %920
        %922 = vrot.lane.b32.xlu0 %v470, 112
        %v923 = vpop.permute.xlu0 %922
        %924 = vrot.lane.b32.xlu0 %v551, 112
        %v925 = vpop.permute.xlu0 %924
        %926 = vrot.lane.b32.xlu0 %v553, 112
        %v927 = vpop.permute.xlu0 %926
        %928 = vrot.lane.b32.xlu0 %v476, 112
        %v929 = vpop.permute.xlu0 %928
        %930 = vrot.lane.b32.xlu0 %v557, 112
        %v931 = vpop.permute.xlu0 %930
        %932 = vrot.lane.b32.xlu0 %v559, 112
        %v933 = vpop.permute.xlu0 %932
        %v934 = vsel %vm819, %v917, %v919
        %v935 = vsel %vm819, %v919, %v921
        %v936 = vsel %vm819, %v923, %v925
        %v937 = vsel %vm819, %v925, %v927
        %v938 = vsel %vm819, %v929, %v931
        %v939 = vsel %vm819, %v931, %v933
        %v949 = vmul.f32 %v379, %v934
        %v950 = vmul.f32 %v381, %v935
        %v951 = vmul.f32 %v462, %v921
        %v952 = vmul.f32 %v385, %v936
        %v953 = vmul.f32 %v387, %v937
        %v954 = vmul.f32 %v468, %v927
        %v955 = vmul.f32 %v391, %v938
        %v956 = vmul.f32 %v393, %v939
        %v957 = vmul.f32 %v474, %v933
        %v958 = vmax.f32 %v906, %v949
        %v959 = vmax.f32 %v907, %v950
        %v960 = vmax.f32 %v908, %v951
        %v961 = vmax.f32 %v909, %v952
        %v962 = vmax.f32 %v910, %v953
        %v963 = vmax.f32 %v911, %v954
        %v964 = vmax.f32 %v912, %v955
        %v965 = vmax.f32 %v913, %v956
        %v966 = vmax.f32 %v914, %v957
        %vm967 = vcmask 1046528
        %v968 = vrot.slane %v464, 1
        %v969 = vrot.slane %v470, 1
        %v970 = vsel %vm967, %v968, %v969
        %v971 = vrot.slane %v545, 1
        %v972 = vrot.slane %v551, 1
        %v973 = vsel %vm967, %v971, %v972
        %v974 = vrot.slane %v476, 1
        %v975 = vsel %vm967, %v969, %v974
        %v976 = vrot.slane %v557, 1
        %v977 = vsel %vm967, %v972, %v976
        %978 = vrot.lane.b32.xlu0 %v970, 16
        %v979 = vpop.permute.xlu0 %978
        %980 = vrot.lane.b32.xlu0 %v973, 16
        %v981 = vpop.permute.xlu0 %980
        %982 = vrot.lane.b32.xlu0 %v975, 16
        %v983 = vpop.permute.xlu0 %982
        %984 = vrot.lane.b32.xlu0 %v977, 16
        %v985 = vpop.permute.xlu0 %984
        %986 = vrot.lane.b32.xlu0 %v974, 16
        %v987 = vpop.permute.xlu0 %986
        %988 = vrot.lane.b32.xlu0 %v976, 16
        %v989 = vpop.permute.xlu0 %988
        %v990 = vsel %vm747, %v979, %v981
        %v991 = vsel %vm747, %v983, %v985
        %v992 = vsel %vm747, %v987, %v989
        %v1002 = vmul.f32 %v379, %v979
        %v1003 = vmul.f32 %v381, %v990
        %v1004 = vmul.f32 %v462, %v981
        %v1005 = vmul.f32 %v385, %v983
        %v1006 = vmul.f32 %v387, %v991
        %v1007 = vmul.f32 %v468, %v985
        %v1008 = vmul.f32 %v391, %v987
        %v1009 = vmul.f32 %v393, %v992
        %v1010 = vmul.f32 %v474, %v989
        %v1011 = vmax.f32 %v958, %v1002
        %v1012 = vmax.f32 %v959, %v1003
        %v1013 = vmax.f32 %v960, %v1004
        %v1014 = vmax.f32 %v961, %v1005
        %v1015 = vmax.f32 %v962, %v1006
        %v1016 = vmax.f32 %v963, %v1007
        %v1017 = vmax.f32 %v964, %v1008
        %v1018 = vmax.f32 %v965, %v1009
        %v1019 = vmax.f32 %v966, %v1010
        %v1020 = vrot.slane %v547, 1
        %v1021 = vrot.slane %v553, 1
        %v1022 = vsel %vm967, %v1020, %v1021
        %v1023 = vrot.slane %v559, 1
        %v1024 = vsel %vm967, %v1021, %v1023
        %v1034 = vmul.f32 %v379, %v970
        %v1035 = vmul.f32 %v381, %v973
        %v1036 = vmul.f32 %v462, %v1022
        %v1037 = vmul.f32 %v385, %v975
        %v1038 = vmul.f32 %v387, %v977
        %v1039 = vmul.f32 %v468, %v1024
        %v1040 = vmul.f32 %v391, %v974
        %v1041 = vmul.f32 %v393, %v976
        %v1042 = vmul.f32 %v474, %v1023
        %v1043 = vmax.f32 %v1011, %v1034
        %v1044 = vmax.f32 %v1012, %v1035
        %v1045 = vmax.f32 %v1013, %v1036
        %v1046 = vmax.f32 %v1014, %v1037
        %v1047 = vmax.f32 %v1015, %v1038
        %v1048 = vmax.f32 %v1016, %v1039
        %v1049 = vmax.f32 %v1017, %v1040
        %v1050 = vmax.f32 %v1018, %v1041
        %v1051 = vmax.f32 %v1019, %v1042
        %1052 = vrot.lane.b32.xlu0 %v970, 112
        %v1053 = vpop.permute.xlu0 %1052
        %1054 = vrot.lane.b32.xlu0 %v973, 112
        %v1055 = vpop.permute.xlu0 %1054
        %1056 = vrot.lane.b32.xlu0 %v1022, 112
        %v1057 = vpop.permute.xlu0 %1056
        %1058 = vrot.lane.b32.xlu0 %v975, 112
        %v1059 = vpop.permute.xlu0 %1058
        %1060 = vrot.lane.b32.xlu0 %v977, 112
        %v1061 = vpop.permute.xlu0 %1060
        %1062 = vrot.lane.b32.xlu0 %v1024, 112
        %v1063 = vpop.permute.xlu0 %1062
        %1064 = vrot.lane.b32.xlu0 %v974, 112
        %v1065 = vpop.permute.xlu0 %1064
        %1066 = vrot.lane.b32.xlu0 %v976, 112
        %v1067 = vpop.permute.xlu0 %1066
        %1068 = vrot.lane.b32.xlu0 %v1023, 112
        %v1069 = vpop.permute.xlu0 %1068
        %v1070 = vsel %vm819, %v1053, %v1055
        %v1071 = vsel %vm819, %v1055, %v1057
        %v1072 = vsel %vm819, %v1059, %v1061
        %v1073 = vsel %vm819, %v1061, %v1063
        %v1074 = vsel %vm819, %v1065, %v1067
        %v1075 = vsel %vm819, %v1067, %v1069
        %v1085 = vmul.f32 %v379, %v1070
        %v1086 = vmul.f32 %v381, %v1071
        %v1087 = vmul.f32 %v462, %v1057
        %v1088 = vmul.f32 %v385, %v1072
        %v1089 = vmul.f32 %v387, %v1073
        %v1090 = vmul.f32 %v468, %v1063
        %v1091 = vmul.f32 %v391, %v1074
        %v1092 = vmul.f32 %v393, %v1075
        %v1093 = vmul.f32 %v474, %v1069
        %v1094 = vmax.f32 %v1043, %v1085
        %v1095 = vmax.f32 %v1044, %v1086
        %v1096 = vmax.f32 %v1045, %v1087
        %v1097 = vmax.f32 %v1046, %v1088
        %v1098 = vmax.f32 %v1047, %v1089
        %v1099 = vmax.f32 %v1048, %v1090
        %v1100 = vmax.f32 %v1049, %v1091
        %v1101 = vmax.f32 %v1050, %v1092
        %v1102 = vmax.f32 %v1051, %v1093
        %v1103 = vsub.f32 %v760, %v1094
        %v1104 = vsub.f32 %v761, %v1095
        %v1105 = vsub.f32 %v762, %v1096
        %v1106 = vsub.f32 %v763, %v1097
        %v1107 = vsub.f32 %v764, %v1098
        %v1108 = vsub.f32 %v765, %v1099
        %v1109 = vsub.f32 %v766, %v1100
        %v1110 = vsub.f32 %v767, %v1101
        %v1111 = vsub.f32 %v768, %v1102
        %v1112 = vmul.f32 %v1103, 1.442695
        %v1113 = vpow.pop %v1112
        %v1114 = vmul.f32 %v1104, 1.442695
        %v1115 = vpow.pop %v1114
        %v1116 = vmul.f32 %v1105, 1.442695
        %v1117 = vpow.pop %v1116
        %v1118 = vmul.f32 %v1106, 1.442695
        %v1119 = vpow.pop %v1118
        %v1120 = vmul.f32 %v1107, 1.442695
        %v1121 = vpow.pop %v1120
        %v1122 = vmul.f32 %v1108, 1.442695
        %v1123 = vpow.pop %v1122
        %v1124 = vmul.f32 %v1109, 1.442695
        %v1125 = vpow.pop %v1124
        %v1126 = vmul.f32 %v1110, 1.442695
        %v1127 = vpow.pop %v1126
        %v1128 = vmul.f32 %v1111, 1.442695
        %v1129 = vpow.pop %v1128
        %v1130 = vld [vmem:[#allocation7] ss:$8 sm:$0x3]
        %v1132 = vlaneseq
        %v1133 = vshrl.u32 %v1132, 7
        %v1134 = vsub.s32 0, %v1133
        %v1135 = vrot.slane %v1130, %v1134
        %v1136 = vlaneseq
        %v1137 = vshrl.u32 %v1136, 7
        %v1138 = vsub.s32 1, %v1137
        %v1139 = vrot.slane %v1130, %v1138
        %v1142 = vadd.f32 %v628, %v1135
        %v1143 = vadd.f32 %v630, %v1139
        %v1144 = vadd.f32 %v634, %v1135
        %v1145 = vadd.f32 %v636, %v1139
        %v1146 = vadd.f32 %v1113, 0.0
        %v1147 = vadd.f32 %v1115, 0.0
        %v1148 = vadd.f32 %v1117, 0.0
        %v1149 = vadd.f32 %v1119, 0.0
        %v1150 = vadd.f32 %v1121, 0.0
        %v1151 = vadd.f32 %v1123, 0.0
        %v1152 = vadd.f32 %v1125, 0.0
        %v1153 = vadd.f32 %v1127, 0.0
        %v1154 = vadd.f32 %v1129, 0.0
        %v1159 = vrot.slane %v1142, 7
        %v1160 = vrot.slane %v1143, 7
        %v1161 = vrot.slane %v1144, 7
        %v1162 = vsel %vm728, %v1159, %v1161
        %v1163 = vrot.slane %v1145, 7
        %v1164 = vsel %vm728, %v1160, %v1163
        %1165 = vrot.lane.b32.xlu0 %v1159, 16
        %v1166 = vpop.permute.xlu0 %1165
        %1167 = vrot.lane.b32.xlu0 %v1160, 16
        %v1168 = vpop.permute.xlu0 %1167
        %1169 = vrot.lane.b32.xlu0 %v1162, 16
        %v1170 = vpop.permute.xlu0 %1169
        %1171 = vrot.lane.b32.xlu0 %v1164, 16
        %v1172 = vpop.permute.xlu0 %1171
        %1173 = vrot.lane.b32.xlu0 %v1161, 16
        %v1174 = vpop.permute.xlu0 %1173
        %1175 = vrot.lane.b32.xlu0 %v1163, 16
        %v1176 = vpop.permute.xlu0 %1175
        %v1177 = vsel %vm747, %v1166, %v1168
        %v1178 = vsel %vm747, %v1170, %v1172
        %v1179 = vsel %vm747, %v1174, %v1176
        %v1189 = vmul.f32 %v1113, %v1166
        %v1190 = vmul.f32 %v1115, %v1177
        %v1191 = vmul.f32 %v1117, %v1168
        %v1192 = vmul.f32 %v1119, %v1170
        %v1193 = vmul.f32 %v1121, %v1178
        %v1194 = vmul.f32 %v1123, %v1172
        %v1195 = vmul.f32 %v1125, %v1174
        %v1196 = vmul.f32 %v1127, %v1179
        %v1197 = vmul.f32 %v1129, %v1176
        %v1198 = vadd.f32 %v1189, 0.0
        %v1199 = vadd.f32 %v1190, 0.0
        %v1200 = vadd.f32 %v1191, 0.0
        %v1201 = vadd.f32 %v1192, 0.0
        %v1202 = vadd.f32 %v1193, 0.0
        %v1203 = vadd.f32 %v1194, 0.0
        %v1204 = vadd.f32 %v1195, 0.0
        %v1205 = vadd.f32 %v1196, 0.0
        %v1206 = vadd.f32 %v1197, 0.0
        %v1207 = vsub.f32 %v783, %v1094
        %v1208 = vsub.f32 %v784, %v1095
        %v1209 = vsub.f32 %v785, %v1096
        %v1210 = vsub.f32 %v786, %v1097
        %v1211 = vsub.f32 %v787, %v1098
        %v1212 = vsub.f32 %v788, %v1099
        %v1213 = vsub.f32 %v789, %v1100
        %v1214 = vsub.f32 %v790, %v1101
        %v1215 = vsub.f32 %v791, %v1102
        %v1216 = vmul.f32 %v1207, 1.442695
        %v1217 = vpow.pop %v1216
        %v1218 = vmul.f32 %v1208, 1.442695
        %v1219 = vpow.pop %v1218
        %v1220 = vmul.f32 %v1209, 1.442695
        %v1221 = vpow.pop %v1220
        %v1222 = vmul.f32 %v1210, 1.442695
        %v1223 = vpow.pop %v1222
        %v1224 = vmul.f32 %v1211, 1.442695
        %v1225 = vpow.pop %v1224
        %v1226 = vmul.f32 %v1212, 1.442695
        %v1227 = vpow.pop %v1226
        %v1228 = vmul.f32 %v1213, 1.442695
        %v1229 = vpow.pop %v1228
        %v1230 = vmul.f32 %v1214, 1.442695
        %v1231 = vpow.pop %v1230
        %v1232 = vmul.f32 %v1215, 1.442695
        %v1233 = vpow.pop %v1232
        %s1234 = scalar_lea.vmem [#allocation7], 1
        %v1235 = vld [vmem:[%s1234] ss:$8 sm:$0x3]
        %v1237 = vlaneseq
        %v1238 = vshrl.u32 %v1237, 7
        %v1239 = vsub.s32 0, %v1238
        %v1240 = vrot.slane %v1235, %v1239
        %v1241 = vlaneseq
        %v1242 = vshrl.u32 %v1241, 7
        %v1243 = vsub.s32 1, %v1242
        %v1244 = vrot.slane %v1235, %v1243
        %1245 = vrot.lane.b32.xlu0 %v1240, 16
        %v1246 = vpop.permute.xlu0 %1245
        %1247 = vrot.lane.b32.xlu0 %v1244, 16
        %v1248 = vpop.permute.xlu0 %1247
        %v1249 = vsel %vm747, %v1246, %v1248
        %v1253 = vadd.f32 %v628, %v1246
        %v1254 = vadd.f32 %v630, %v1249
        %v1255 = vadd.f32 %v711, %v1248
        %v1256 = vadd.f32 %v634, %v1246
        %v1257 = vadd.f32 %v636, %v1249
        %v1258 = vadd.f32 %v716, %v1248
        %v1259 = vadd.f32 %v1146, %v1217
        %v1260 = vadd.f32 %v1147, %v1219
        %v1261 = vadd.f32 %v1148, %v1221
        %v1262 = vadd.f32 %v1149, %v1223
        %v1263 = vadd.f32 %v1150, %v1225
        %v1264 = vadd.f32 %v1151, %v1227
        %v1265 = vadd.f32 %v1152, %v1229
        %v1266 = vadd.f32 %v1153, %v1231
        %v1267 = vadd.f32 %v1154, %v1233
        %v1274 = vrot.slane %v1253, 7
        %v1275 = vrot.slane %v1254, 7
        %v1276 = vrot.slane %v1255, 7
        %v1277 = vrot.slane %v1256, 7
        %v1278 = vsel %vm728, %v1274, %v1277
        %v1279 = vrot.slane %v1257, 7
        %v1280 = vsel %vm728, %v1275, %v1279
        %v1281 = vrot.slane %v1258, 7
        %v1282 = vsel %vm728, %v1276, %v1281
        %v1292 = vmul.f32 %v1217, %v1274
        %v1293 = vmul.f32 %v1219, %v1275
        %v1294 = vmul.f32 %v1221, %v1276
        %v1295 = vmul.f32 %v1223, %v1278
        %v1296 = vmul.f32 %v1225, %v1280
        %v1297 = vmul.f32 %v1227, %v1282
        %v1298 = vmul.f32 %v1229, %v1277
        %v1299 = vmul.f32 %v1231, %v1279
        %v1300 = vmul.f32 %v1233, %v1281
        %v1301 = vadd.f32 %v1198, %v1292
        %v1302 = vadd.f32 %v1199, %v1293
        %v1303 = vadd.f32 %v1200, %v1294
        %v1304 = vadd.f32 %v1201, %v1295
        %v1305 = vadd.f32 %v1202, %v1296
        %v1306 = vadd.f32 %v1203, %v1297
        %v1307 = vadd.f32 %v1204, %v1298
        %v1308 = vadd.f32 %v1205, %v1299
        %v1309 = vadd.f32 %v1206, %v1300
        %v1310 = vsub.f32 %v835, %v1094
        %v1311 = vsub.f32 %v836, %v1095
        %v1312 = vsub.f32 %v837, %v1096
        %v1313 = vsub.f32 %v838, %v1097
        %v1314 = vsub.f32 %v839, %v1098
        %v1315 = vsub.f32 %v840, %v1099
        %v1316 = vsub.f32 %v841, %v1100
        %v1317 = vsub.f32 %v842, %v1101
        %v1318 = vsub.f32 %v843, %v1102
        %v1319 = vmul.f32 %v1310, 1.442695
        %v1320 = vpow.pop %v1319
        %v1321 = vmul.f32 %v1311, 1.442695
        %v1322 = vpow.pop %v1321
        %v1323 = vmul.f32 %v1312, 1.442695
        %v1324 = vpow.pop %v1323
        %v1325 = vmul.f32 %v1313, 1.442695
        %v1326 = vpow.pop %v1325
        %v1327 = vmul.f32 %v1314, 1.442695
        %v1328 = vpow.pop %v1327
        %v1329 = vmul.f32 %v1315, 1.442695
        %v1330 = vpow.pop %v1329
        %v1331 = vmul.f32 %v1316, 1.442695
        %v1332 = vpow.pop %v1331
        %v1333 = vmul.f32 %v1317, 1.442695
        %v1334 = vpow.pop %v1333
        %v1335 = vmul.f32 %v1318, 1.442695
        %v1336 = vpow.pop %v1335
        %s1337 = scalar_lea.vmem [#allocation7], 2
        %v1338 = vld [vmem:[%s1337] ss:$8 sm:$0x3]
        %v1340 = vlaneseq
        %v1341 = vshrl.u32 %v1340, 7
        %v1342 = vsub.s32 0, %v1341
        %v1343 = vrot.slane %v1338, %v1342
        %v1344 = vlaneseq
        %v1345 = vshrl.u32 %v1344, 7
        %v1346 = vsub.s32 1, %v1345
        %v1347 = vrot.slane %v1338, %v1346
        %1348 = vrot.lane.b32.xlu0 %v1343, 32
        %v1349 = vpop.permute.xlu0 %1348
        %1350 = vrot.lane.b32.xlu0 %v1347, 32
        %v1351 = vpop.permute.xlu0 %1350
        %vm1352 = vcmask 261120
        %v1353 = vsel %vm1352, %v1349, %v1351
        %v1357 = vadd.f32 %v628, %v1349
        %v1358 = vadd.f32 %v630, %v1353
        %v1359 = vadd.f32 %v711, %v1351
        %v1360 = vadd.f32 %v634, %v1349
        %v1361 = vadd.f32 %v636, %v1353
        %v1362 = vadd.f32 %v716, %v1351
        %v1363 = vadd.f32 %v1259, %v1320
        %v1364 = vadd.f32 %v1260, %v1322
        %v1365 = vadd.f32 %v1261, %v1324
        %v1366 = vadd.f32 %v1262, %v1326
        %v1367 = vadd.f32 %v1263, %v1328
        %v1368 = vadd.f32 %v1264, %v1330
        %v1369 = vadd.f32 %v1265, %v1332
        %v1370 = vadd.f32 %v1266, %v1334
        %v1371 = vadd.f32 %v1267, %v1336
        %v1378 = vrot.slane %v1357, 7
        %v1379 = vrot.slane %v1358, 7
        %v1380 = vrot.slane %v1359, 7
        %v1381 = vrot.slane %v1360, 7
        %v1382 = vsel %vm728, %v1378, %v1381
        %v1383 = vrot.slane %v1361, 7
        %v1384 = vsel %vm728, %v1379, %v1383
        %v1385 = vrot.slane %v1362, 7
        %v1386 = vsel %vm728, %v1380, %v1385
        %1387 = vrot.lane.b32.xlu0 %v1378, 112
        %v1388 = vpop.permute.xlu0 %1387
        %1389 = vrot.lane.b32.xlu0 %v1379, 112
        %v1390 = vpop.permute.xlu0 %1389
        %1391 = vrot.lane.b32.xlu0 %v1380, 112
        %v1392 = vpop.permute.xlu0 %1391
        %1393 = vrot.lane.b32.xlu0 %v1382, 112
        %v1394 = vpop.permute.xlu0 %1393
        %1395 = vrot.lane.b32.xlu0 %v1384, 112
        %v1396 = vpop.permute.xlu0 %1395
        %1397 = vrot.lane.b32.xlu0 %v1386, 112
        %v1398 = vpop.permute.xlu0 %1397
        %1399 = vrot.lane.b32.xlu0 %v1381, 112
        %v1400 = vpop.permute.xlu0 %1399
        %1401 = vrot.lane.b32.xlu0 %v1383, 112
        %v1402 = vpop.permute.xlu0 %1401
        %1403 = vrot.lane.b32.xlu0 %v1385, 112
        %v1404 = vpop.permute.xlu0 %1403
        %v1405 = vsel %vm819, %v1388, %v1390
        %v1406 = vsel %vm819, %v1390, %v1392
        %v1407 = vsel %vm819, %v1394, %v1396
        %v1408 = vsel %vm819, %v1396, %v1398
        %v1409 = vsel %vm819, %v1400, %v1402
        %v1410 = vsel %vm819, %v1402, %v1404
        %v1420 = vmul.f32 %v1320, %v1405
        %v1421 = vmul.f32 %v1322, %v1406
        %v1422 = vmul.f32 %v1324, %v1392
        %v1423 = vmul.f32 %v1326, %v1407
        %v1424 = vmul.f32 %v1328, %v1408
        %v1425 = vmul.f32 %v1330, %v1398
        %v1426 = vmul.f32 %v1332, %v1409
        %v1427 = vmul.f32 %v1334, %v1410
        %v1428 = vmul.f32 %v1336, %v1404
        %v1429 = vadd.f32 %v1301, %v1420
        %v1430 = vadd.f32 %v1302, %v1421
        %v1431 = vadd.f32 %v1303, %v1422
        %v1432 = vadd.f32 %v1304, %v1423
        %v1433 = vadd.f32 %v1305, %v1424
        %v1434 = vadd.f32 %v1306, %v1425
        %v1435 = vadd.f32 %v1307, %v1426
        %v1436 = vadd.f32 %v1308, %v1427
        %v1437 = vadd.f32 %v1309, %v1428
        %v1438 = vsub.f32 %v879, %v1094
        %v1439 = vsub.f32 %v880, %v1095
        %v1440 = vsub.f32 %v881, %v1096
        %v1441 = vsub.f32 %v882, %v1097
        %v1442 = vsub.f32 %v883, %v1098
        %v1443 = vsub.f32 %v884, %v1099
        %v1444 = vsub.f32 %v885, %v1100
        %v1445 = vsub.f32 %v886, %v1101
        %v1446 = vsub.f32 %v887, %v1102
        %v1447 = vmul.f32 %v1438, 1.442695
        %v1448 = vpow.pop %v1447
        %v1449 = vmul.f32 %v1439, 1.442695
        %v1450 = vpow.pop %v1449
        %v1451 = vmul.f32 %v1440, 1.442695
        %v1452 = vpow.pop %v1451
        %v1453 = vmul.f32 %v1441, 1.442695
        %v1454 = vpow.pop %v1453
        %v1455 = vmul.f32 %v1442, 1.442695
        %v1456 = vpow.pop %v1455
        %v1457 = vmul.f32 %v1443, 1.442695
        %v1458 = vpow.pop %v1457
        %v1459 = vmul.f32 %v1444, 1.442695
        %v1460 = vpow.pop %v1459
        %v1461 = vmul.f32 %v1445, 1.442695
        %v1462 = vpow.pop %v1461
        %v1463 = vmul.f32 %v1446, 1.442695
        %v1464 = vpow.pop %v1463
        %s1465 = scalar_lea.vmem [#allocation7], 3
        %v1466 = vld [vmem:[%s1465] ss:$8 sm:$0x3]
        %v1468 = vlaneseq
        %v1469 = vshrl.u32 %v1468, 7
        %v1470 = vsub.s32 0, %v1469
        %v1471 = vrot.slane %v1466, %v1470
        %v1472 = vlaneseq
        %v1473 = vshrl.u32 %v1472, 7
        %v1474 = vsub.s32 1, %v1473
        %v1475 = vrot.slane %v1466, %v1474
        %v1478 = vadd.f32 %v628, %v1471
        %v1479 = vadd.f32 %v630, %v1475
        %v1480 = vadd.f32 %v634, %v1471
        %v1481 = vadd.f32 %v636, %v1475
        %v1482 = vadd.f32 %v640, %v1471
        %v1483 = vadd.f32 %v642, %v1475
        %v1484 = vadd.f32 %v1363, %v1448
        %v1485 = vadd.f32 %v1364, %v1450
        %v1486 = vadd.f32 %v1365, %v1452
        %v1487 = vadd.f32 %v1366, %v1454
        %v1488 = vadd.f32 %v1367, %v1456
        %v1489 = vadd.f32 %v1368, %v1458
        %v1490 = vadd.f32 %v1369, %v1460
        %v1491 = vadd.f32 %v1370, %v1462
        %v1492 = vadd.f32 %v1371, %v1464
        %1499 = vrot.lane.b32.xlu0 %v1478, 16
        %v1500 = vpop.permute.xlu0 %1499
        %1501 = vrot.lane.b32.xlu0 %v1479, 16
        %v1502 = vpop.permute.xlu0 %1501
        %1503 = vrot.lane.b32.xlu0 %v1480, 16
        %v1504 = vpop.permute.xlu0 %1503
        %1505 = vrot.lane.b32.xlu0 %v1481, 16
        %v1506 = vpop.permute.xlu0 %1505
        %1507 = vrot.lane.b32.xlu0 %v1482, 16
        %v1508 = vpop.permute.xlu0 %1507
        %1509 = vrot.lane.b32.xlu0 %v1483, 16
        %v1510 = vpop.permute.xlu0 %1509
        %v1511 = vsel %vm747, %v1500, %v1502
        %v1512 = vsel %vm747, %v1504, %v1506
        %v1513 = vsel %vm747, %v1508, %v1510
        %v1523 = vmul.f32 %v1448, %v1500
        %v1524 = vmul.f32 %v1450, %v1511
        %v1525 = vmul.f32 %v1452, %v1502
        %v1526 = vmul.f32 %v1454, %v1504
        %v1527 = vmul.f32 %v1456, %v1512
        %v1528 = vmul.f32 %v1458, %v1506
        %v1529 = vmul.f32 %v1460, %v1508
        %v1530 = vmul.f32 %v1462, %v1513
        %v1531 = vmul.f32 %v1464, %v1510
        %v1532 = vadd.f32 %v1429, %v1523
        %v1533 = vadd.f32 %v1430, %v1524
        %v1534 = vadd.f32 %v1431, %v1525
        %v1535 = vadd.f32 %v1432, %v1526
        %v1536 = vadd.f32 %v1433, %v1527
        %v1537 = vadd.f32 %v1434, %v1528
        %v1538 = vadd.f32 %v1435, %v1529
        %v1539 = vadd.f32 %v1436, %v1530
        %v1540 = vadd.f32 %v1437, %v1531
        %v1541 = vsub.f32 %v897, %v1094
        %v1542 = vsub.f32 %v898, %v1095
        %v1543 = vsub.f32 %v899, %v1096
        %v1544 = vsub.f32 %v900, %v1097
        %v1545 = vsub.f32 %v901, %v1098
        %v1546 = vsub.f32 %v902, %v1099
        %v1547 = vsub.f32 %v903, %v1100
        %v1548 = vsub.f32 %v904, %v1101
        %v1549 = vsub.f32 %v905, %v1102
        %v1550 = vmul.f32 %v1541, 1.442695
        %v1551 = vpow.pop %v1550
        %v1552 = vmul.f32 %v1542, 1.442695
        %v1553 = vpow.pop %v1552
        %v1554 = vmul.f32 %v1543, 1.442695
        %v1555 = vpow.pop %v1554
        %v1556 = vmul.f32 %v1544, 1.442695
        %v1557 = vpow.pop %v1556
        %v1558 = vmul.f32 %v1545, 1.442695
        %v1559 = vpow.pop %v1558
        %v1560 = vmul.f32 %v1546, 1.442695
        %v1561 = vpow.pop %v1560
        %v1562 = vmul.f32 %v1547, 1.442695
        %v1563 = vpow.pop %v1562
        %v1564 = vmul.f32 %v1548, 1.442695
        %v1565 = vpow.pop %v1564
        %v1566 = vmul.f32 %v1549, 1.442695
        %v1567 = vpow.pop %v1566
        %s1568 = scalar_lea.vmem [#allocation7], 4
        %v1569 = vld [vmem:[%s1568] ss:$8 sm:$0x3]
        %v1571 = vlaneseq
        %v1572 = vshrl.u32 %v1571, 7
        %v1573 = vsub.s32 0, %v1572
        %v1574 = vrot.slane %v1569, %v1573
        %v1575 = vlaneseq
        %v1576 = vshrl.u32 %v1575, 7
        %v1577 = vsub.s32 1, %v1576
        %v1578 = vrot.slane %v1569, %v1577
        %1579 = vrot.lane.b32.xlu0 %v1574, 16
        %v1580 = vpop.permute.xlu0 %1579
        %1581 = vrot.lane.b32.xlu0 %v1578, 16
        %v1582 = vpop.permute.xlu0 %1581
        %v1583 = vsel %vm747, %v1580, %v1582
        %v1587 = vadd.f32 %v628, %v1580
        %v1588 = vadd.f32 %v630, %v1583
        %v1589 = vadd.f32 %v711, %v1582
        %v1590 = vadd.f32 %v634, %v1580
        %v1591 = vadd.f32 %v636, %v1583
        %v1592 = vadd.f32 %v716, %v1582
        %v1593 = vadd.f32 %v640, %v1580
        %v1594 = vadd.f32 %v642, %v1583
        %v1595 = vadd.f32 %v721, %v1582
        %v1596 = vadd.f32 %v1484, %v1551
        %v1597 = vadd.f32 %v1485, %v1553
        %v1598 = vadd.f32 %v1486, %v1555
        %v1599 = vadd.f32 %v1487, %v1557
        %v1600 = vadd.f32 %v1488, %v1559
        %v1601 = vadd.f32 %v1489, %v1561
        %v1602 = vadd.f32 %v1490, %v1563
        %v1603 = vadd.f32 %v1491, %v1565
        %v1604 = vadd.f32 %v1492, %v1567
        %v1605 = vmul.f32 %v1551, %v1587
        %v1606 = vmul.f32 %v1553, %v1588
        %v1607 = vmul.f32 %v1555, %v1589
        %v1608 = vmul.f32 %v1557, %v1590
        %v1609 = vmul.f32 %v1559, %v1591
        %v1610 = vmul.f32 %v1561, %v1592
        %v1611 = vmul.f32 %v1563, %v1593
        %v1612 = vmul.f32 %v1565, %v1594
        %v1613 = vmul.f32 %v1567, %v1595
        %v1614 = vadd.f32 %v1532, %v1605
        %v1615 = vadd.f32 %v1533, %v1606
        %v1616 = vadd.f32 %v1534, %v1607
        %v1617 = vadd.f32 %v1535, %v1608
        %v1618 = vadd.f32 %v1536, %v1609
        %v1619 = vadd.f32 %v1537, %v1610
        %v1620 = vadd.f32 %v1538, %v1611
        %v1621 = vadd.f32 %v1539, %v1612
        %v1622 = vadd.f32 %v1540, %v1613
        %v1623 = vsub.f32 %v949, %v1094
        %v1624 = vsub.f32 %v950, %v1095
        %v1625 = vsub.f32 %v951, %v1096
        %v1626 = vsub.f32 %v952, %v1097
        %v1627 = vsub.f32 %v953, %v1098
        %v1628 = vsub.f32 %v954, %v1099
        %v1629 = vsub.f32 %v955, %v1100
        %v1630 = vsub.f32 %v956, %v1101
        %v1631 = vsub.f32 %v957, %v1102
        %v1632 = vmul.f32 %v1623, 1.442695
        %v1633 = vpow.pop %v1632
        %v1634 = vmul.f32 %v1624, 1.442695
        %v1635 = vpow.pop %v1634
        %v1636 = vmul.f32 %v1625, 1.442695
        %v1637 = vpow.pop %v1636
        %v1638 = vmul.f32 %v1626, 1.442695
        %v1639 = vpow.pop %v1638
        %v1640 = vmul.f32 %v1627, 1.442695
        %v1641 = vpow.pop %v1640
        %v1642 = vmul.f32 %v1628, 1.442695
        %v1643 = vpow.pop %v1642
        %v1644 = vmul.f32 %v1629, 1.442695
        %v1645 = vpow.pop %v1644
        %v1646 = vmul.f32 %v1630, 1.442695
        %v1647 = vpow.pop %v1646
        %v1648 = vmul.f32 %v1631, 1.442695
        %v1649 = vpow.pop %v1648
        %s1650 = scalar_lea.vmem [#allocation7], 5
        %v1651 = vld [vmem:[%s1650] ss:$8 sm:$0x3]
        %v1653 = vlaneseq
        %v1654 = vshrl.u32 %v1653, 7
        %v1655 = vsub.s32 0, %v1654
        %v1656 = vrot.slane %v1651, %v1655
        %v1657 = vlaneseq
        %v1658 = vshrl.u32 %v1657, 7
        %v1659 = vsub.s32 1, %v1658
        %v1660 = vrot.slane %v1651, %v1659
        %1661 = vrot.lane.b32.xlu0 %v1656, 32
        %v1662 = vpop.permute.xlu0 %1661
        %1663 = vrot.lane.b32.xlu0 %v1660, 32
        %v1664 = vpop.permute.xlu0 %1663
        %v1665 = vsel %vm1352, %v1662, %v1664
        %v1669 = vadd.f32 %v628, %v1662
        %v1670 = vadd.f32 %v630, %v1665
        %v1671 = vadd.f32 %v711, %v1664
        %v1672 = vadd.f32 %v634, %v1662
        %v1673 = vadd.f32 %v636, %v1665
        %v1674 = vadd.f32 %v716, %v1664
        %v1675 = vadd.f32 %v640, %v1662
        %v1676 = vadd.f32 %v642, %v1665
        %v1677 = vadd.f32 %v721, %v1664
        %v1678 = vadd.f32 %v1596, %v1633
        %v1679 = vadd.f32 %v1597, %v1635
        %v1680 = vadd.f32 %v1598, %v1637
        %v1681 = vadd.f32 %v1599, %v1639
        %v1682 = vadd.f32 %v1600, %v1641
        %v1683 = vadd.f32 %v1601, %v1643
        %v1684 = vadd.f32 %v1602, %v1645
        %v1685 = vadd.f32 %v1603, %v1647
        %v1686 = vadd.f32 %v1604, %v1649
        %1696 = vrot.lane.b32.xlu0 %v1669, 112
        %v1697 = vpop.permute.xlu0 %1696
        %1698 = vrot.lane.b32.xlu0 %v1670, 112
        %v1699 = vpop.permute.xlu0 %1698
        %1700 = vrot.lane.b32.xlu0 %v1671, 112
        %v1701 = vpop.permute.xlu0 %1700
        %1702 = vrot.lane.b32.xlu0 %v1672, 112
        %v1703 = vpop.permute.xlu0 %1702
        %1704 = vrot.lane.b32.xlu0 %v1673, 112
        %v1705 = vpop.permute.xlu0 %1704
        %1706 = vrot.lane.b32.xlu0 %v1674, 112
        %v1707 = vpop.permute.xlu0 %1706
        %1708 = vrot.lane.b32.xlu0 %v1675, 112
        %v1709 = vpop.permute.xlu0 %1708
        %1710 = vrot.lane.b32.xlu0 %v1676, 112
        %v1711 = vpop.permute.xlu0 %1710
        %1712 = vrot.lane.b32.xlu0 %v1677, 112
        %v1713 = vpop.permute.xlu0 %1712
        %v1714 = vsel %vm819, %v1697, %v1699
        %v1715 = vsel %vm819, %v1699, %v1701
        %v1716 = vsel %vm819, %v1703, %v1705
        %v1717 = vsel %vm819, %v1705, %v1707
        %v1718 = vsel %vm819, %v1709, %v1711
        %v1719 = vsel %vm819, %v1711, %v1713
        %v1729 = vmul.f32 %v1633, %v1714
        %v1730 = vmul.f32 %v1635, %v1715
        %v1731 = vmul.f32 %v1637, %v1701
        %v1732 = vmul.f32 %v1639, %v1716
        %v1733 = vmul.f32 %v1641, %v1717
        %v1734 = vmul.f32 %v1643, %v1707
        %v1735 = vmul.f32 %v1645, %v1718
        %v1736 = vmul.f32 %v1647, %v1719
        %v1737 = vmul.f32 %v1649, %v1713
        %v1738 = vadd.f32 %v1614, %v1729
        %v1739 = vadd.f32 %v1615, %v1730
        %v1740 = vadd.f32 %v1616, %v1731
        %v1741 = vadd.f32 %v1617, %v1732
        %v1742 = vadd.f32 %v1618, %v1733
        %v1743 = vadd.f32 %v1619, %v1734
        %v1744 = vadd.f32 %v1620, %v1735
        %v1745 = vadd.f32 %v1621, %v1736
        %v1746 = vadd.f32 %v1622, %v1737
        %v1747 = vsub.f32 %v1002, %v1094
        %v1748 = vsub.f32 %v1003, %v1095
        %v1749 = vsub.f32 %v1004, %v1096
        %v1750 = vsub.f32 %v1005, %v1097
        %v1751 = vsub.f32 %v1006, %v1098
        %v1752 = vsub.f32 %v1007, %v1099
        %v1753 = vsub.f32 %v1008, %v1100
        %v1754 = vsub.f32 %v1009, %v1101
        %v1755 = vsub.f32 %v1010, %v1102
        %v1756 = vmul.f32 %v1747, 1.442695
        %v1757 = vpow.pop %v1756
        %v1758 = vmul.f32 %v1748, 1.442695
        %v1759 = vpow.pop %v1758
        %v1760 = vmul.f32 %v1749, 1.442695
        %v1761 = vpow.pop %v1760
        %v1762 = vmul.f32 %v1750, 1.442695
        %v1763 = vpow.pop %v1762
        %v1764 = vmul.f32 %v1751, 1.442695
        %v1765 = vpow.pop %v1764
        %v1766 = vmul.f32 %v1752, 1.442695
        %v1767 = vpow.pop %v1766
        %v1768 = vmul.f32 %v1753, 1.442695
        %v1769 = vpow.pop %v1768
        %v1770 = vmul.f32 %v1754, 1.442695
        %v1771 = vpow.pop %v1770
        %v1772 = vmul.f32 %v1755, 1.442695
        %v1773 = vpow.pop %v1772
        %s1774 = scalar_lea.vmem [#allocation7], 6
        %v1775 = vld [vmem:[%s1774] ss:$8 sm:$0x3]
        %v1777 = vlaneseq
        %v1778 = vshrl.u32 %v1777, 7
        %v1779 = vsub.s32 0, %v1778
        %v1780 = vrot.slane %v1775, %v1779
        %v1781 = vlaneseq
        %v1782 = vshrl.u32 %v1781, 7
        %v1783 = vsub.s32 1, %v1782
        %v1784 = vrot.slane %v1775, %v1783
        %v1787 = vadd.f32 %v628, %v1780
        %v1788 = vadd.f32 %v630, %v1784
        %v1789 = vadd.f32 %v634, %v1780
        %v1790 = vadd.f32 %v636, %v1784
        %v1791 = vadd.f32 %v640, %v1780
        %v1792 = vadd.f32 %v642, %v1784
        %v1793 = vadd.f32 %v1678, %v1757
        %v1794 = vadd.f32 %v1679, %v1759
        %v1795 = vadd.f32 %v1680, %v1761
        %v1796 = vadd.f32 %v1681, %v1763
        %v1797 = vadd.f32 %v1682, %v1765
        %v1798 = vadd.f32 %v1683, %v1767
        %v1799 = vadd.f32 %v1684, %v1769
        %v1800 = vadd.f32 %v1685, %v1771
        %v1801 = vadd.f32 %v1686, %v1773
        %v1808 = vrot.slane %v1787, 1
        %v1809 = vrot.slane %v1789, 1
        %v1810 = vsel %vm967, %v1808, %v1809
        %v1811 = vrot.slane %v1788, 1
        %v1812 = vrot.slane %v1790, 1
        %v1813 = vsel %vm967, %v1811, %v1812
        %v1814 = vrot.slane %v1791, 1
        %v1815 = vsel %vm967, %v1809, %v1814
        %v1816 = vrot.slane %v1792, 1
        %v1817 = vsel %vm967, %v1812, %v1816
        %1818 = vrot.lane.b32.xlu0 %v1810, 16
        %v1819 = vpop.permute.xlu0 %1818
        %1820 = vrot.lane.b32.xlu0 %v1813, 16
        %v1821 = vpop.permute.xlu0 %1820
        %1822 = vrot.lane.b32.xlu0 %v1815, 16
        %v1823 = vpop.permute.xlu0 %1822
        %1824 = vrot.lane.b32.xlu0 %v1817, 16
        %v1825 = vpop.permute.xlu0 %1824
        %1826 = vrot.lane.b32.xlu0 %v1814, 16
        %v1827 = vpop.permute.xlu0 %1826
        %1828 = vrot.lane.b32.xlu0 %v1816, 16
        %v1829 = vpop.permute.xlu0 %1828
        %v1830 = vsel %vm747, %v1819, %v1821
        %v1831 = vsel %vm747, %v1823, %v1825
        %v1832 = vsel %vm747, %v1827, %v1829
        %v1842 = vmul.f32 %v1757, %v1819
        %v1843 = vmul.f32 %v1759, %v1830
        %v1844 = vmul.f32 %v1761, %v1821
        %v1845 = vmul.f32 %v1763, %v1823
        %v1846 = vmul.f32 %v1765, %v1831
        %v1847 = vmul.f32 %v1767, %v1825
        %v1848 = vmul.f32 %v1769, %v1827
        %v1849 = vmul.f32 %v1771, %v1832
        %v1850 = vmul.f32 %v1773, %v1829
        %v1851 = vadd.f32 %v1738, %v1842
        %v1852 = vadd.f32 %v1739, %v1843
        %v1853 = vadd.f32 %v1740, %v1844
        %v1854 = vadd.f32 %v1741, %v1845
        %v1855 = vadd.f32 %v1742, %v1846
        %v1856 = vadd.f32 %v1743, %v1847
        %v1857 = vadd.f32 %v1744, %v1848
        %v1858 = vadd.f32 %v1745, %v1849
        %v1859 = vadd.f32 %v1746, %v1850
        %v1860 = vsub.f32 %v1034, %v1094
        %v1861 = vsub.f32 %v1035, %v1095
        %v1862 = vsub.f32 %v1036, %v1096
        %v1863 = vsub.f32 %v1037, %v1097
        %v1864 = vsub.f32 %v1038, %v1098
        %v1865 = vsub.f32 %v1039, %v1099
        %v1866 = vsub.f32 %v1040, %v1100
        %v1867 = vsub.f32 %v1041, %v1101
        %v1868 = vsub.f32 %v1042, %v1102
        %v1869 = vmul.f32 %v1860, 1.442695
        %v1870 = vpow.pop %v1869
        %v1871 = vmul.f32 %v1861, 1.442695
        %v1872 = vpow.pop %v1871
        %v1873 = vmul.f32 %v1862, 1.442695
        %v1874 = vpow.pop %v1873
        %v1875 = vmul.f32 %v1863, 1.442695
        %v1876 = vpow.pop %v1875
        %v1877 = vmul.f32 %v1864, 1.442695
        %v1878 = vpow.pop %v1877
        %v1879 = vmul.f32 %v1865, 1.442695
        %v1880 = vpow.pop %v1879
        %v1881 = vmul.f32 %v1866, 1.442695
        %v1882 = vpow.pop %v1881
        %v1883 = vmul.f32 %v1867, 1.442695
        %v1884 = vpow.pop %v1883
        %v1885 = vmul.f32 %v1868, 1.442695
        %v1886 = vpow.pop %v1885
        %s1887 = scalar_lea.vmem [#allocation7], 7
        %v1888 = vld [vmem:[%s1887] ss:$8 sm:$0x3]
        %v1890 = vlaneseq
        %v1891 = vshrl.u32 %v1890, 7
        %v1892 = vsub.s32 0, %v1891
        %v1893 = vrot.slane %v1888, %v1892
        %v1894 = vlaneseq
        %v1895 = vshrl.u32 %v1894, 7
        %v1896 = vsub.s32 1, %v1895
        %v1897 = vrot.slane %v1888, %v1896
        %1898 = vrot.lane.b32.xlu0 %v1893, 16
        %v1899 = vpop.permute.xlu0 %1898
        %1900 = vrot.lane.b32.xlu0 %v1897, 16
        %v1901 = vpop.permute.xlu0 %1900
        %v1902 = vsel %vm747, %v1899, %v1901
        %v1906 = vadd.f32 %v628, %v1899
        %v1907 = vadd.f32 %v630, %v1902
        %v1908 = vadd.f32 %v711, %v1901
        %v1909 = vadd.f32 %v634, %v1899
        %v1910 = vadd.f32 %v636, %v1902
        %v1911 = vadd.f32 %v716, %v1901
        %v1912 = vadd.f32 %v640, %v1899
        %v1913 = vadd.f32 %v642, %v1902
        %v1914 = vadd.f32 %v721, %v1901
        %v1915 = vadd.f32 %v1793, %v1870
        %v1916 = vadd.f32 %v1794, %v1872
        %v1917 = vadd.f32 %v1795, %v1874
        %v1918 = vadd.f32 %v1796, %v1876
        %v1919 = vadd.f32 %v1797, %v1878
        %v1920 = vadd.f32 %v1798, %v1880
        %v1921 = vadd.f32 %v1799, %v1882
        %v1922 = vadd.f32 %v1800, %v1884
        %v1923 = vadd.f32 %v1801, %v1886
        %v1933 = vrot.slane %v1906, 1
        %v1934 = vrot.slane %v1909, 1
        %v1935 = vsel %vm967, %v1933, %v1934
        %v1936 = vrot.slane %v1907, 1
        %v1937 = vrot.slane %v1910, 1
        %v1938 = vsel %vm967, %v1936, %v1937
        %v1939 = vrot.slane %v1908, 1
        %v1940 = vrot.slane %v1911, 1
        %v1941 = vsel %vm967, %v1939, %v1940
        %v1942 = vrot.slane %v1912, 1
        %v1943 = vsel %vm967, %v1934, %v1942
        %v1944 = vrot.slane %v1913, 1
        %v1945 = vsel %vm967, %v1937, %v1944
        %v1946 = vrot.slane %v1914, 1
        %v1947 = vsel %vm967, %v1940, %v1946
        %v1957 = vmul.f32 %v1870, %v1935
        %v1958 = vmul.f32 %v1872, %v1938
        %v1959 = vmul.f32 %v1874, %v1941
        %v1960 = vmul.f32 %v1876, %v1943
        %v1961 = vmul.f32 %v1878, %v1945
        %v1962 = vmul.f32 %v1880, %v1947
        %v1963 = vmul.f32 %v1882, %v1942
        %v1964 = vmul.f32 %v1884, %v1944
        %v1965 = vmul.f32 %v1886, %v1946
        %v1966 = vadd.f32 %v1851, %v1957
        %v1967 = vadd.f32 %v1852, %v1958
        %v1968 = vadd.f32 %v1853, %v1959
        %v1969 = vadd.f32 %v1854, %v1960
        %v1970 = vadd.f32 %v1855, %v1961
        %v1971 = vadd.f32 %v1856, %v1962
        %v1972 = vadd.f32 %v1857, %v1963
        %v1973 = vadd.f32 %v1858, %v1964
        %v1974 = vadd.f32 %v1859, %v1965
        %v1975 = vsub.f32 %v1085, %v1094
        %v1976 = vsub.f32 %v1086, %v1095
        %v1977 = vsub.f32 %v1087, %v1096
        %v1978 = vsub.f32 %v1088, %v1097
        %v1979 = vsub.f32 %v1089, %v1098
        %v1980 = vsub.f32 %v1090, %v1099
        %v1981 = vsub.f32 %v1091, %v1100
        %v1982 = vsub.f32 %v1092, %v1101
        %v1983 = vsub.f32 %v1093, %v1102
        %v1984 = vmul.f32 %v1975, 1.442695
        %v1985 = vpow.pop %v1984
        %v1986 = vmul.f32 %v1976, 1.442695
        %v1987 = vpow.pop %v1986
        %v1988 = vmul.f32 %v1977, 1.442695
        %v1989 = vpow.pop %v1988
        %v1990 = vmul.f32 %v1978, 1.442695
        %v1991 = vpow.pop %v1990
        %v1992 = vmul.f32 %v1979, 1.442695
        %v1993 = vpow.pop %v1992
        %v1994 = vmul.f32 %v1980, 1.442695
        %v1995 = vpow.pop %v1994
        %v1996 = vmul.f32 %v1981, 1.442695
        %v1997 = vpow.pop %v1996
        %v1998 = vmul.f32 %v1982, 1.442695
        %v1999 = vpow.pop %v1998
        %v2000 = vmul.f32 %v1983, 1.442695
        %v2001 = vpow.pop %v2000
        %s2002 = scalar_lea.vmem [#allocation7], 16
        %v2003 = vld [vmem:[%s2002] ss:$8 sm:$0x3]
        %v2005 = vlaneseq
        %v2006 = vshrl.u32 %v2005, 7
        %v2007 = vsub.s32 0, %v2006
        %v2008 = vrot.slane %v2003, %v2007
        %v2009 = vlaneseq
        %v2010 = vshrl.u32 %v2009, 7
        %v2011 = vsub.s32 1, %v2010
        %v2012 = vrot.slane %v2003, %v2011
        %2013 = vrot.lane.b32.xlu0 %v2008, 32
        %v2014 = vpop.permute.xlu0 %2013
        %2015 = vrot.lane.b32.xlu0 %v2012, 32
        %v2016 = vpop.permute.xlu0 %2015
        %v2017 = vsel %vm1352, %v2014, %v2016
        %v2021 = vadd.f32 %v628, %v2014
        %v2022 = vadd.f32 %v630, %v2017
        %v2023 = vadd.f32 %v711, %v2016
        %v2024 = vadd.f32 %v634, %v2014
        %v2025 = vadd.f32 %v636, %v2017
        %v2026 = vadd.f32 %v716, %v2016
        %v2027 = vadd.f32 %v640, %v2014
        %v2028 = vadd.f32 %v642, %v2017
        %v2029 = vadd.f32 %v721, %v2016
        %v2030 = vadd.f32 %v1915, %v1985
        %v2031 = vadd.f32 %v1916, %v1987
        %v2032 = vadd.f32 %v1917, %v1989
        %v2033 = vadd.f32 %v1918, %v1991
        %v2034 = vadd.f32 %v1919, %v1993
        %v2035 = vadd.f32 %v1920, %v1995
        %v2036 = vadd.f32 %v1921, %v1997
        %v2037 = vadd.f32 %v1922, %v1999
        %v2038 = vadd.f32 %v1923, %v2001
        %v2048 = vrot.slane %v2021, 1
        %v2049 = vrot.slane %v2024, 1
        %v2050 = vsel %vm967, %v2048, %v2049
        %v2051 = vrot.slane %v2022, 1
        %v2052 = vrot.slane %v2025, 1
        %v2053 = vsel %vm967, %v2051, %v2052
        %v2054 = vrot.slane %v2023, 1
        %v2055 = vrot.slane %v2026, 1
        %v2056 = vsel %vm967, %v2054, %v2055
        %v2057 = vrot.slane %v2027, 1
        %v2058 = vsel %vm967, %v2049, %v2057
        %v2059 = vrot.slane %v2028, 1
        %v2060 = vsel %vm967, %v2052, %v2059
        %v2061 = vrot.slane %v2029, 1
        %v2062 = vsel %vm967, %v2055, %v2061
        %2063 = vrot.lane.b32.xlu0 %v2050, 112
        %v2064 = vpop.permute.xlu0 %2063
        %2065 = vrot.lane.b32.xlu0 %v2053, 112
        %v2066 = vpop.permute.xlu0 %2065
        %2067 = vrot.lane.b32.xlu0 %v2056, 112
        %v2068 = vpop.permute.xlu0 %2067
        %2069 = vrot.lane.b32.xlu0 %v2058, 112
        %v2070 = vpop.permute.xlu0 %2069
        %2071 = vrot.lane.b32.xlu0 %v2060, 112
        %v2072 = vpop.permute.xlu0 %2071
        %2073 = vrot.lane.b32.xlu0 %v2062, 112
        %v2074 = vpop.permute.xlu0 %2073
        %2075 = vrot.lane.b32.xlu0 %v2057, 112
        %v2076 = vpop.permute.xlu0 %2075
        %2077 = vrot.lane.b32.xlu0 %v2059, 112
        %v2078 = vpop.permute.xlu0 %2077
        %2079 = vrot.lane.b32.xlu0 %v2061, 112
        %v2080 = vpop.permute.xlu0 %2079
        %v2081 = vsel %vm819, %v2064, %v2066
        %v2082 = vsel %vm819, %v2066, %v2068
        %v2083 = vsel %vm819, %v2070, %v2072
        %v2084 = vsel %vm819, %v2072, %v2074
        %v2085 = vsel %vm819, %v2076, %v2078
        %v2086 = vsel %vm819, %v2078, %v2080
        %v2096 = vmul.f32 %v1985, %v2081
        %v2097 = vmul.f32 %v1987, %v2082
        %v2098 = vmul.f32 %v1989, %v2068
        %v2099 = vmul.f32 %v1991, %v2083
        %v2100 = vmul.f32 %v1993, %v2084
        %v2101 = vmul.f32 %v1995, %v2074
        %v2102 = vmul.f32 %v1997, %v2085
        %v2103 = vmul.f32 %v1999, %v2086
        %v2104 = vmul.f32 %v2001, %v2080
        %v2105 = vadd.f32 %v1966, %v2096
        %v2106 = vadd.f32 %v1967, %v2097
        %v2107 = vadd.f32 %v1968, %v2098
        %v2108 = vadd.f32 %v1969, %v2099
        %v2109 = vadd.f32 %v1970, %v2100
        %v2110 = vadd.f32 %v1971, %v2101
        %v2111 = vadd.f32 %v1972, %v2102
        %v2112 = vadd.f32 %v1973, %v2103
        %v2113 = vadd.f32 %v1974, %v2104
        %v2114 = vrcp.pop %v2030
        %v2115 = vmul.f32 %v2105, %v2114
        %v2116 = vrcp.pop %v2031
        %v2117 = vmul.f32 %v2106, %v2116
        %v2118 = vrcp.pop %v2032
        %v2119 = vmul.f32 %v2107, %v2118
        %v2120 = vrcp.pop %v2033
        %v2121 = vmul.f32 %v2108, %v2120
        %v2122 = vrcp.pop %v2034
        %v2123 = vmul.f32 %v2109, %v2122
        %v2124 = vrcp.pop %v2035
        %v2125 = vmul.f32 %v2110, %v2124
        %v2126 = vrcp.pop %v2036
        %v2127 = vmul.f32 %v2111, %v2126
        %v2128 = vrcp.pop %v2037
        %v2129 = vmul.f32 %v2112, %v2128
        %v2130 = vrcp.pop %v2038
        %v2131 = vmul.f32 %v2113, %v2130
        %v2141 = vrot.slane %v2115, 1
        %v2142 = vrot.slane %v2121, 1
        %v2143 = vsel %vm967, %v2141, %v2142
        %v2144 = vrot.slane %v2117, 1
        %v2145 = vrot.slane %v2123, 1
        %v2146 = vsel %vm967, %v2144, %v2145
        %v2147 = vrot.slane %v2119, 1
        %v2148 = vrot.slane %v2125, 1
        %v2149 = vsel %vm967, %v2147, %v2148
        %v2150 = vrot.slane %v2127, 1
        %v2151 = vsel %vm967, %v2142, %v2150
        %v2152 = vrot.slane %v2129, 1
        %v2153 = vsel %vm967, %v2145, %v2152
        %v2154 = vrot.slane %v2131, 1
        %v2155 = vsel %vm967, %v2148, %v2154
        %2156 = vrot.lane.b32.xlu0 %v2143, 112
        %v2157 = vpop.permute.xlu0 %2156
        %2158 = vrot.lane.b32.xlu0 %v2146, 112
        %v2159 = vpop.permute.xlu0 %2158
        %2160 = vrot.lane.b32.xlu0 %v2149, 112
        %v2161 = vpop.permute.xlu0 %2160
        %2162 = vrot.lane.b32.xlu0 %v2151, 112
        %v2163 = vpop.permute.xlu0 %2162
        %2164 = vrot.lane.b32.xlu0 %v2153, 112
        %v2165 = vpop.permute.xlu0 %2164
        %2166 = vrot.lane.b32.xlu0 %v2155, 112
        %v2167 = vpop.permute.xlu0 %2166
        %v2168 = vsel %vm819, %v2157, %v2159
        %v2169 = vsel %vm819, %v2159, %v2161
        %v2170 = vsel %vm819, %v2163, %v2165
        %v2171 = vsel %vm819, %v2165, %v2167
        %2176 = vst [vmem:[%s217] sm:$0xff] %v2168
        %2177 = vst [vmem:[%s217 + $0x8] sm:$0xff] %v2169
        %2178 = vst [vmem:[%s217 + $0x10] sm:$0xff] %v2170
        %2179 = vst [vmem:[%s217 + $0x18] sm:$0xff] %v2171
        %s2180 = sand.u32 %s97, 1
        %s2181 = scalar_lea.sflag [#allocation4], %s2180
        %s2182 = sand.u32 %s97, 1
        %s2183 = smul.addr %s2182, 32
        %s2184 = scalar_lea.vmem [#allocation8], %s2183
        // Predicated region
        $region45: #{tpu_custom_call.1} parent=31 // pred_check
          %p2185 = pneg %p107
        $region46: #{tpu_custom_call.1} parent=31 // pred_check_branch
          %2187 = sbr.rel (%p2185) target = $region48
        $region47: #{tpu_custom_call.1} parent=31 // pred_region
          %s2189 = ssub.s32 512, 512
          %2190 = vsyncadd %s2181, %s2189
          %s2191 = smul.addr %s21, 4
          %s2192 = smul.addr %s2191, 128
          %s2193 = scalar_lea.hbm %s3, %s2192
          %s2194 = sshll.u32 %s2184, 4
          %s2195 = int_to_ptr.vmem [resolvable:$true] %s2194
          %2200 = dma.vmem_to_hbm [thread:$0]  %s2195, 512, %s2193, %s2181, 256, 256, 16
        $region48: #{tpu_custom_call.1} parent=31 // pred_fallthru
          _
      $region32: #{tpu_custom_call.1} parent=5 // pred_fallthru
        _
      %p2201 = scmp.le.s32.totalorder 2, %s16
      // Predicated region
      $region49: #{tpu_custom_call.1} parent=5 // pred_check
        %p2202 = pneg %p2201
      $region50: #{tpu_custom_call.1} parent=5 // pred_check_branch
        %2204 = sbr.rel (%p2202) target = $region52
      $region51: #{tpu_custom_call.1} parent=5 // pred_region
        %s2205 = ssub.s32 %s16, 2
        // Predicated region
        $region53: #{tpu_custom_call.1} parent=51 // pred_check
          %p2206 = pneg %p113
        $region54: #{tpu_custom_call.1} parent=51 // pred_check_branch
          %2208 = sbr.rel (%p2206) target = $region56
        $region55: #{tpu_custom_call.1} parent=51 // pred_region
          %s2209 = sand.u32 %s98, 1
          %s2210 = scalar_lea.sflag [#allocation4], %s2209
          %s2211 = sand.u32 %s98, 1
          %s2212 = smul.addr %s2211, 32
          %s2213 = scalar_lea.vmem [#allocation8], %s2212
          %2214 = dma.done %s2210, 512
        $region56: #{tpu_custom_call.1} parent=51 // pred_fallthru
          _
      $region52: #{tpu_custom_call.1} parent=5 // pred_fallthru
        _
    $region6: #{tpu_custom_call.1} parent=1 // loop_footer
      %s20 = sadd.s32 1, %s16
    $region7: #{tpu_custom_call.1} parent=1 // loop_footer_branch
      %15 = sbr.rel target = $region3
    $region8: #{tpu_custom_call.1} parent=1 // loop_exit
      _
    %2215 = vsyncpa [#allocation3], 1
    %s2216 = scalar_lea.sflag [#allocation3], 1
    %2217 = vsyncpa %s2216, 1
    %2218 = vsyncpa [#allocation6], 1
    %2219 = vsyncpa [#allocation4], 1
    %s2220 = scalar_lea.sflag [#allocation4], 1
    %2221 = vsyncpa %s2220, 1

</llo_original>
